<compile_context>
chip_gen: v5e
topology: v5e:2x2
jax: 0.10.0
libtpu: 0.0.40
codegen_flags: <defaults>
</compile_context>

<pallas_src>
import jax
import jax.numpy as jnp
from jax.experimental import pallas as pl
from jax.experimental.pallas import tpu as pltpu


def _round_up(v, m):
    return (v + m - 1) // m * m


def _dirsage_kernel(lhs_ref, rhs_ref, b_ref, o_ref):
    # Single fused MXU matmul (bf16 operands, f32 accumulation):
    #   [x | A_s2d | A_d2s]_tile @ [Wself^T ; (1-a)*xW1^T ; a*xW2^T]
    acc = jnp.dot(lhs_ref[...], rhs_ref[...], preferred_element_type=jnp.float32)
    # f32 epilogue: single fused bias, lane-dense store.
    o_ref[...] = (acc + b_ref[...]).astype(o_ref.dtype)


def dirsage_conv(x, edge_index, params, alpha, *, tile_rows=512):
    """x: [N, F_in] float32, edge_index: [2, E] int32."""
    n, f_in = x.shape
    w_self, b_self = params["w_self"], params["b_self"]   # [F_out, F_in], [F_out]
    w_s2d, b_s2d = params["w_s2d"], params["b_s2d"]
    w_d2s, b_d2s = params["w_d2s"], params["b_d2s"]
    f_out = w_self.shape[0]
    alpha = jnp.float32(alpha)

    # ---- padded / tiled sizes --------------------------------------------
    f_in_pad = _round_up(f_in, 128)            # x's K segment, lane aligned
    f_out_pad = _round_up(f_out, 128)          # lane-dense output stores
    n_pad = _round_up(n, 128)

    # pick row tile so one (TM, K) bf16 LHS tile stays under ~4 MiB
    k_est = f_in_pad + 2 * n_pad
    tm = 128
    for t in (512, 256, 128):
        if t <= min(tile_rows, n_pad) and t * k_est * 2 <= 4 * 1024 * 1024:
            tm = t
            break
    n_pad = _round_up(n_pad, tm)
    k_tot = f_in_pad + 2 * n_pad
    grid = (n_pad // tm,)

    src = edge_index[0].astype(jnp.int32)
    dst = edge_index[1].astype(jnp.int32)
    ones = jnp.ones((edge_index.shape[1],), jnp.float32)

    # ---- glue: edge list -> dense mean-normalized adjacencies (f32 normalize,
    # then cast to bf16 for the MXU).  Padded / zero-degree rows stay zero.
    a_s2d = jnp.zeros((n_pad, n_pad), jnp.float32).at[dst, src].add(ones)
    a_s2d = a_s2d / jnp.clip(a_s2d.sum(axis=1, keepdims=True), 1.0, None)
    a_d2s = jnp.zeros((n_pad, n_pad), jnp.float32).at[src, dst].add(ones)
    a_d2s = a_d2s / jnp.clip(a_d2s.sum(axis=1, keepdims=True), 1.0, None)

    # ---- glue: fold alpha into weights, re-associate A @ (x @ W) ----------
    x_pad = jnp.zeros((n_pad, f_in), jnp.float32).at[:n, :].set(x)
    y1 = (1.0 - alpha) * (x_pad @ w_s2d.T)     # [N_pad, F_out], tile-invariant
    y2 = alpha * (x_pad @ w_d2s.T)             # [N_pad, F_out], tile-invariant

    # LHS = [x | A_s2d | A_d2s]  (streamed, row-tiled)
    lhs = jnp.zeros((n_pad, k_tot), jnp.float32)
    lhs = lhs.at[:, :f_in].set(x_pad)
    lhs = lhs.at[:, f_in_pad:f_in_pad + n_pad].set(a_s2d)
    lhs = lhs.at[:, f_in_pad + n_pad:].set(a_d2s)
    lhs = lhs.astype(jnp.bfloat16)

    # RHS = [Wself^T ; (1-a)*xW1^T ; a*xW2^T]  (resident in VMEM)
    rhs = jnp.zeros((k_tot, f_out_pad), jnp.float32)
    rhs = rhs.at[:f_in, :f_out].set(w_self.T)
    rhs = rhs.at[f_in_pad:f_in_pad + n_pad, :f_out].set(y1)
    rhs = rhs.at[f_in_pad + n_pad:, :f_out].set(y2)
    rhs = rhs.astype(jnp.bfloat16)

    b_fused = b_self + (1.0 - alpha) * b_s2d + alpha * b_d2s
    b_cat = jnp.zeros((1, f_out_pad), jnp.float32).at[0, :f_out].set(b_fused)

    cost = pl.CostEstimate(
        flops=int(2 * n_pad * k_tot * f_out_pad),
        transcendentals=0,
        bytes_accessed=int(lhs.size * 2 + rhs.size * 2 + b_cat.size * 4
                           + n_pad * f_out_pad * 4),
    )

    out = pl.pallas_call(
        _dirsage_kernel,
        out_shape=jax.ShapeDtypeStruct((n_pad, f_out_pad), jnp.float32),
        grid=grid,
        in_specs=[
            pl.BlockSpec((tm, k_tot), lambda i: (i, 0)),          # [x|A|A] row tile
            pl.BlockSpec((k_tot, f_out_pad), lambda i: (0, 0)),   # fused RHS (resident)
            pl.BlockSpec((1, f_out_pad), lambda i: (0, 0)),       # fused bias
        ],
        out_specs=pl.BlockSpec((tm, f_out_pad), lambda i: (i, 0)),
        compiler_params=pltpu.CompilerParams(
            dimension_semantics=("parallel",),      # shard row tiles across TCs (v7x)
            vmem_limit_bytes=48 * 1024 * 1024,
        ),
        cost_estimate=cost,
    )(lhs, rhs, b_cat)

    return out[:n, :f_out]


def dirsage_conv_ref(x, edge_index, params, alpha):
    """Pure-JAX f32 reference for sanity checking."""
    n = x.shape[0]
    src, dst = edge_index[0], edge_index[1]
    ones = jnp.ones((edge_index.shape[1],), jnp.float32)

    a_s2d = jnp.zeros((n, n), jnp.float32).at[dst, src].add(ones)
    a_s2d = a_s2d / jnp.clip(a_s2d.sum(axis=1, keepdims=True), 1.0, None)
    a_d2s = jnp.zeros((n, n), jnp.float32).at[src, dst].add(ones)
    a_d2s = a_d2s / jnp.clip(a_d2s.sum(axis=1, keepdims=True), 1.0, None)

    h_self = x @ params["w_self"].T + params["b_self"]
    h1 = (a_s2d @ x) @ params["w_s2d"].T + params["b_s2d"]
    h2 = (a_d2s @ x) @ params["w_d2s"].T + params["b_d2s"]
    return h_self + (1.0 - alpha) * h1 + alpha * h2


def init_params(key, input_dim, output_dim):
    ks = jax.random.split(key, 6)
    scale = 1.0 / jnp.sqrt(jnp.float32(input_dim))
    u = lambda k, s: jax.random.uniform(k, s, jnp.float32, -scale, scale)
    return {
        "w_self": u(ks[0], (output_dim, input_dim)),
        "b_self": u(ks[1], (output_dim,)),
        "w_s2d": u(ks[2], (output_dim, input_dim)),
        "b_s2d": u(ks[3], (output_dim,)),
        "w_d2s": u(ks[4], (output_dim, input_dim)),
        "b_d2s": u(ks[5], (output_dim,)),
    }


if __name__ == "__main__":
    N, E = 512, 2048                   # small graph; tile_rows=128 -> 4-tile row grid
    INPUT_DIM, OUTPUT_DIM = 32, 48     # non-multiple-of-128 F_out exercises padding
    ALPHA = 0.3

    key = jax.random.PRNGKey(0)
    kx, ke1, ke2, kp = jax.random.split(key, 4)

    x = jax.random.normal(kx, (N, INPUT_DIM), jnp.float32)
    src = jax.random.randint(ke1, (E,), 0, N, jnp.int32)
    dst = jax.random.randint(ke2, (E,), 0, N, jnp.int32)
    edge_index = jnp.stack([src, dst], axis=0)  # [2, E]

    params = init_params(kp, INPUT_DIM, OUTPUT_DIM)

    out = dirsage_conv(x, edge_index, params, ALPHA, tile_rows=128)
    out = jax.block_until_ready(out)

    ref = dirsage_conv_ref(x, edge_index, params, ALPHA)
    assert out.shape == (N, OUTPUT_DIM)
    # bf16 MXU operands -> loosened tolerance vs the exact f32 reference
    assert jnp.allclose(out, ref, atol=5e-2, rtol=5e-2)

    print("KERNEL_OK")
</pallas_src>

<mosaic_0001>
module attributes {stable_mosaic.version = 11 : i64} {
  func.func @_dirsage_kernel(%arg0: i32, %arg1: memref<128x1152xbf16, #tpu.memory_space<vmem>>, %arg2: memref<1152x128xbf16, #tpu.memory_space<vmem>>, %arg3: memref<1x128xf32, #tpu.memory_space<vmem>>, %arg4: memref<128x128xf32, #tpu.memory_space<vmem>>) attributes {dimension_semantics = [#tpu.dimension_semantics<parallel>], iteration_bounds = array<i64: 4>, scalar_prefetch = 0 : i64, scratch_operands = 0 : i64, tpu.core_type = #tpu.core_type<tc>, window_params = [{transform_indices = @transform_0, window_bounds = array<i64: 128, 1152>}, {pipeline_mode = #tpu.pipeline_mode<synchronous>, transform_indices = @transform_1, window_bounds = array<i64: 1152, 128>}, {pipeline_mode = #tpu.pipeline_mode<synchronous>, transform_indices = @transform_2, window_bounds = array<i64: 1, 128>}, {transform_indices = @transform_3, window_bounds = array<i64: 128, 128>}]} {
    %c0 = arith.constant 0 : index
    %c0_0 = arith.constant 0 : index
    %0 = vector.load %arg1[%c0, %c0_0] : memref<128x1152xbf16, #tpu.memory_space<vmem>>, vector<128x1152xbf16>
    %c0_1 = arith.constant 0 : index
    %c0_2 = arith.constant 0 : index
    %1 = vector.load %arg2[%c0_1, %c0_2] : memref<1152x128xbf16, #tpu.memory_space<vmem>>, vector<1152x128xbf16>
    %cst = arith.constant dense<0.000000e+00> : vector<128x128xf32>
    %2 = tpu.matmul %0, %1, %cst {dimension_numbers = #tpu.dot_dimension_numbers<[1], [0], [0], [1], [0, 0, 1, 1], [], []>} : vector<128x1152xbf16>, vector<1152x128xbf16>, vector<128x128xf32> -> vector<128x128xf32>
    %c0_3 = arith.constant 0 : index
    %c0_4 = arith.constant 0 : index
    %3 = vector.load %arg3[%c0_3, %c0_4] : memref<1x128xf32, #tpu.memory_space<vmem>>, vector<1x128xf32>
    %4 = vector.broadcast %3 : vector<1x128xf32> to vector<128x128xf32>
    %5 = arith.addf %2, %4 : vector<128x128xf32>
    %c0_5 = arith.constant 0 : index
    %c0_6 = arith.constant 0 : index
    %6 = vector.load %arg4[%c0_5, %c0_6] : memref<128x128xf32, #tpu.memory_space<vmem>>, vector<128x128xf32>
    tpu.vector_store %arg4[%c0_5, %c0_6], %5 {strides = array<i32>} : memref<128x128xf32, #tpu.memory_space<vmem>>, vector<128x128xf32>,
    return
  }
  func.func @transform_0(%arg0: i32) -> (i32, i32) {
    %c0_i32 = arith.constant 0 : i32
    %c0_i32_0 = arith.constant 0 : i32
    return %arg0, %c0_i32 : i32, i32
  }
  func.func @transform_1(%arg0: i32) -> (i32, i32) {
    %c0_i32 = arith.constant 0 : i32
    %c0_i32_0 = arith.constant 0 : i32
    %c0_i32_1 = arith.constant 0 : i32
    return %c0_i32, %c0_i32_0 : i32, i32
  }
  func.func @transform_2(%arg0: i32) -> (i32, i32) {
    %c0_i32 = arith.constant 0 : i32
    %c0_i32_0 = arith.constant 0 : i32
    %c0_i32_1 = arith.constant 0 : i32
    return %c0_i32, %c0_i32_0 : i32, i32
  }
  func.func @transform_3(%arg0: i32) -> (i32, i32) {
    %c0_i32 = arith.constant 0 : i32
    %c0_i32_0 = arith.constant 0 : i32
    return %arg0, %c0_i32 : i32, i32
  }
}

</mosaic_0001>

<llo_original>
// kernel: tpu_custom_call.1
$region0: #{tpu_custom_call.1}
  #allocation0 [shape = 'u32[]', space=smem, size = 0x4, offset = 0x4, fixed_abs, tag = 'smem constant byte address 0x4 - core index']
  #allocation1 [shape = 'u32[72,128]{1,0:T(1,128)}', space=vmem, size = 0x9000, scoped, tag = 'internal scratch']
  %s0 = inlined_call_operand.hbm [shape: bf16[512,1152], index: 0, kind: input, shape index: {}]
  %s1 = inlined_call_operand.hbm [shape: bf16[1152,128], index: 1, kind: input, shape index: {}]
  %s2 = inlined_call_operand.hbm [shape: f32[1,128], index: 2, kind: input, shape index: {}]
  %s3 = inlined_call_operand.hbm [shape: f32[512,128], index: 3, kind: output, shape index: {}]
  %s4 = sld [smem:[#allocation0]]
  $region57: #{tpu_custom_call.1} parent=0
    _
  %s6 = ssub.s32 1, %s4
  %s7 = scalar_select 0, %s6, %s4
  $region1: #{tpu_custom_call.1} parent=0
    #allocation2 [shape = 'u8[589824]{0}', space=vmem, size = 0x90000, scoped, tag = 'input window, operand 0']
    #allocation3 [shape = 's32[2]{0}', space=sflag, size = 0x8, scoped, tag = 'scoped memory for tpu_custom_call.1']
    #allocation4 [shape = 's32[2]{0}', space=sflag, size = 0x8, scoped, tag = 'scoped memory for tpu_custom_call.1']
    #allocation5 [shape = 'u8[294912]{0}', space=vmem, size = 0x48000, scoped, tag = 'input window, operand 1, single buffered']
    #allocation6 [shape = 's32[1]{0}', space=sflag, size = 0x4, scoped, tag = 'scoped memory for tpu_custom_call.1']
    #allocation7 [shape = 'u8[512]{0}', space=vmem, size = 0x400, scoped, tag = 'input window, operand 2, single buffered']
    #allocation8 [shape = 'u8[131072]{0}', space=vmem, size = 0x20000, scoped, tag = 'output window, operand 0']
    %8 = vsyncpa [#allocation3], 0
    %s9 = scalar_lea.sflag [#allocation3], 1
    %10 = vsyncpa %s9, 0
    %11 = vsyncpa [#allocation6], 0
    %12 = vsyncpa [#allocation4], 0
    %s13 = scalar_lea.sflag [#allocation4], 1
    %14 = vsyncpa %s13, 0
    loop: start=0, step=1, limit=6
    $region2: #{tpu_custom_call.1} parent=1 // loop_pre_header
      _
    $region3: #{tpu_custom_call.1} parent=1 // loop_header
      %s16 = sphi 0, %s20
      %p17 = scmp.ge.s32.totalorder %s16, 6
      %s26 = sphi 0, %s28
      %s29 = sphi 0, %s26
      %s30 = sphi 0, %s29
      %s46 = sphi 0, %s30
      %s50 = sphi 0, %s50
      %s52 = sphi 0, %s50
      %s53 = sphi 0, %s52
      %s67 = sphi 0, %s53
      %s71 = sphi 0, %s71
      %s73 = sphi 0, %s71
      %s74 = sphi 0, %s73
      %s88 = sphi 0, %s74
      %s94 = sphi 0, %s96
      %s97 = sphi 0, %s94
      %s98 = sphi 0, %s97
      %s114 = sphi 0, %s98
    $region4: #{tpu_custom_call.1} parent=1 // loop_header_branch
      %19 = sbr.rel (%p17) target = $region8
    $region5: #{tpu_custom_call.1} parent=1 // loop_body
      %s21 = ssub.s32 %s16, 1
      %s22 = ssub.s32 %s16, 2
      %s23 = sadd.s32 %s16, 1
      %s24 = ssub.s32 %s16, %s23
      %p25 = scmp.eq.s32.totalorder %s24, 0
      %s27 = sadd.s32 %s26, 1
      %s28 = scalar_select %p25, %s26, %s27
      %p31 = pneg %p25
      %p32 = scmp.eq.s32.totalorder %s16, 3
      %p33 = por %p31, %p32
      %p34 = scmp.ne.s32.totalorder %s26, %s29
      %p35 = scmp.eq.s32.totalorder %s16, 0
      %p36 = por %p34, %p35
      %p37 = scmp.ne.s32.totalorder %s26, %s29
      %p38 = scmp.eq.s32.totalorder %s21, 3
      %p39 = por %p37, %p38
      %p40 = scmp.ne.s32.totalorder %s29, %s30
      %p41 = scmp.eq.s32.totalorder %s21, 0
      %p42 = por %p40, %p41
      %p43 = scmp.ne.s32.totalorder %s29, %s30
      %p44 = scmp.eq.s32.totalorder %s22, 3
      %p45 = por %p43, %p44
      %p47 = scmp.ne.s32.totalorder %s30, %s46
      %p48 = scmp.eq.s32.totalorder %s22, 0
      %p49 = por %p47, %p48
      %s51 = sadd.s32 %s50, 1
      %p54 = scmp.eq.s32.totalorder %s16, 3
      %p55 = scmp.ne.s32.totalorder %s50, %s52
      %p56 = scmp.eq.s32.totalorder %s16, 0
      %p57 = por %p55, %p56
      %p58 = scmp.ne.s32.totalorder %s50, %s52
      %p59 = scmp.eq.s32.totalorder %s21, 3
      %p60 = por %p58, %p59
      %p61 = scmp.ne.s32.totalorder %s52, %s53
      %p62 = scmp.eq.s32.totalorder %s21, 0
      %p63 = por %p61, %p62
      %p64 = scmp.ne.s32.totalorder %s52, %s53
      %p65 = scmp.eq.s32.totalorder %s22, 3
      %p66 = por %p64, %p65
      %p68 = scmp.ne.s32.totalorder %s53, %s67
      %p69 = scmp.eq.s32.totalorder %s22, 0
      %p70 = por %p68, %p69
      %s72 = sadd.s32 %s71, 1
      %p75 = scmp.eq.s32.totalorder %s16, 3
      %p76 = scmp.ne.s32.totalorder %s71, %s73
      %p77 = scmp.eq.s32.totalorder %s16, 0
      %p78 = por %p76, %p77
      %p79 = scmp.ne.s32.totalorder %s71, %s73
      %p80 = scmp.eq.s32.totalorder %s21, 3
      %p81 = por %p79, %p80
      %p82 = scmp.ne.s32.totalorder %s73, %s74
      %p83 = scmp.eq.s32.totalorder %s21, 0
      %p84 = por %p82, %p83
      %p85 = scmp.ne.s32.totalorder %s73, %s74
      %p86 = scmp.eq.s32.totalorder %s22, 3
      %p87 = por %p85, %p86
      %p89 = scmp.ne.s32.totalorder %s74, %s88
      %p90 = scmp.eq.s32.totalorder %s22, 0
      %p91 = por %p89, %p90
      %s92 = ssub.s32 %s16, %s23
      %p93 = scmp.eq.s32.totalorder %s92, 0
      %s95 = sadd.s32 %s94, 1
      %s96 = scalar_select %p93, %s94, %s95
      %p99 = pneg %p93
      %p100 = scmp.eq.s32.totalorder %s16, 3
      %p101 = por %p99, %p100
      %p102 = scmp.ne.s32.totalorder %s94, %s97
      %p103 = scmp.eq.s32.totalorder %s16, 0
      %p104 = por %p102, %p103
      %p105 = scmp.ne.s32.totalorder %s94, %s97
      %p106 = scmp.eq.s32.totalorder %s21, 3
      %p107 = por %p105, %p106
      %p108 = scmp.ne.s32.totalorder %s97, %s98
      %p109 = scmp.eq.s32.totalorder %s21, 0
      %p110 = por %p108, %p109
      %p111 = scmp.ne.s32.totalorder %s97, %s98
      %p112 = scmp.eq.s32.totalorder %s22, 3
      %p113 = por %p111, %p112
      %p115 = scmp.ne.s32.totalorder %s98, %s114
      %p116 = scmp.eq.s32.totalorder %s22, 0
      %p117 = por %p115, %p116
      %p118 = scmp.le.s32.totalorder 1, %s16
      %p119 = scmp.lt.s32.totalorder %s16, 5
      %p120 = pnand %p118, %p119
      %p121 = pneg %p120
      // Predicated region
      $region9: #{tpu_custom_call.1} parent=5 // pred_check
        _
      $region10: #{tpu_custom_call.1} parent=5 // pred_check_branch
        %123 = sbr.rel (%p120) target = $region12
      $region11: #{tpu_custom_call.1} parent=5 // pred_region
        %s124 = ssub.s32 %s16, 1
        // Predicated region
        $region13: #{tpu_custom_call.1} parent=11 // pred_check
          %p125 = pneg %p63
        $region14: #{tpu_custom_call.1} parent=11 // pred_check_branch
          %127 = sbr.rel (%p125) target = $region16
        $region15: #{tpu_custom_call.1} parent=11 // pred_region
          %129 = vsyncadd [#allocation6], 0
          %s130 = sshll.u32 %s1, 4
          %s131 = int_to_ptr.hbm [resolvable:$true] %s130
          %s132 = sshll.u32 [#allocation5], 4
          %s133 = int_to_ptr.vmem [resolvable:$true] %s132
          %138 = dma.hbm_to_vmem [thread:$0]  %s131, 9216, %s133, [#allocation6], 64, 64, 4
        $region16: #{tpu_custom_call.1} parent=11 // pred_fallthru
          _
        // Predicated region
        $region17: #{tpu_custom_call.1} parent=11 // pred_check
          %p139 = pneg %p84
        $region18: #{tpu_custom_call.1} parent=11 // pred_check_branch
          %141 = sbr.rel (%p139) target = $region20
        $region19: #{tpu_custom_call.1} parent=11 // pred_region
          %143 = vsyncadd [#allocation6], 0
          %s145 = sshll.u32 %s2, 4
          %s146 = int_to_ptr.hbm [resolvable:$true] %s145
          %s147 = sshll.u32 [#allocation7], 4
          %s148 = int_to_ptr.vmem [resolvable:$true] %s147
          %150 = dma.hbm_to_vmem [thread:$0]  %s146, 16, %s148, [#allocation6]
        $region20: #{tpu_custom_call.1} parent=11 // pred_fallthru
          _
      $region12: #{tpu_custom_call.1} parent=5 // pred_fallthru
        _
      %p151 = scmp.lt.s32.totalorder %s16, 4
      // Predicated region
      $region21: #{tpu_custom_call.1} parent=5 // pred_check
        %p152 = pneg %p151
      $region22: #{tpu_custom_call.1} parent=5 // pred_check_branch
        %154 = sbr.rel (%p152) target = $region24
      $region23: #{tpu_custom_call.1} parent=5 // pred_region
        // Predicated region
        $region25: #{tpu_custom_call.1} parent=23 // pred_check
          %p155 = pneg %p36
        $region26: #{tpu_custom_call.1} parent=23 // pred_check_branch
          %157 = sbr.rel (%p155) target = $region28
        $region27: #{tpu_custom_call.1} parent=23 // pred_region
          %s158 = sand.u32 %s26, 1
          %s159 = scalar_lea.sflag [#allocation3], %s158
          %s160 = sand.u32 %s26, 1
          %s161 = smul.addr %s160, 576
          %s162 = scalar_lea.vmem [#allocation2], %s161
          %s163 = smul.u32 16, %s16
          %165 = vsyncadd %s159, 0
          %s166 = smul.addr %s163, 9
          %s167 = smul.addr %s166, 4
          %s168 = scalar_lea.hbm %s0, %s167
          %s169 = sshll.u32 %s168, 4
          %s170 = int_to_ptr.hbm [resolvable:$true] %s169
          %s171 = sshll.u32 %s162, 4
          %s172 = int_to_ptr.vmem [resolvable:$true] %s171
          %177 = dma.hbm_to_vmem [thread:$0]  %s170, 9216, %s172, %s159, 576, 576, 36
        $region28: #{tpu_custom_call.1} parent=23 // pred_fallthru
          _
      $region24: #{tpu_custom_call.1} parent=5 // pred_fallthru
        _
      %p178 = scmp.le.s32.totalorder 1, %s16
      %p179 = scmp.lt.s32.totalorder %s16, 5
      %p180 = pnand %p178, %p179
      %p181 = pneg %p180
      // Predicated region
      $region29: #{tpu_custom_call.1} parent=5 // pred_check
        _
      $region30: #{tpu_custom_call.1} parent=5 // pred_check_branch
        %183 = sbr.rel (%p180) target = $region32
      $region31: #{tpu_custom_call.1} parent=5 // pred_region
        %s184 = ssub.s32 %s16, 1
        %s185 = sand.u32 %s29, 1
        %s186 = scalar_lea.sflag [#allocation3], %s185
        %s187 = sand.u32 %s29, 1
        %s188 = smul.addr %s187, 576
        %s189 = scalar_lea.vmem [#allocation2], %s188
        // Predicated region
        $region33: #{tpu_custom_call.1} parent=31 // pred_check
          %p190 = pneg %p42
        $region34: #{tpu_custom_call.1} parent=31 // pred_check_branch
          %192 = sbr.rel (%p190) target = $region36
        $region35: #{tpu_custom_call.1} parent=31 // pred_region
          %194 = dma.done %s186, 9216
        $region36: #{tpu_custom_call.1} parent=31 // pred_fallthru
          _
        // Predicated region
        $region37: #{tpu_custom_call.1} parent=31 // pred_check
          %p195 = pneg %p63
        $region38: #{tpu_custom_call.1} parent=31 // pred_check_branch
          %197 = sbr.rel (%p195) target = $region40
        $region39: #{tpu_custom_call.1} parent=31 // pred_region
          %199 = dma.done [#allocation6], 9216
        $region40: #{tpu_custom_call.1} parent=31 // pred_fallthru
          _
        // Predicated region
        $region41: #{tpu_custom_call.1} parent=31 // pred_check
          %p200 = pneg %p84
        $region42: #{tpu_custom_call.1} parent=31 // pred_check_branch
          %202 = sbr.rel (%p200) target = $region44
        $region43: #{tpu_custom_call.1} parent=31 // pred_region
          %204 = dma.done [#allocation6], 16
        $region44: #{tpu_custom_call.1} parent=31 // pred_fallthru
          _
        %s205 = sand.u32 %s29, 1
        %s206 = scalar_lea.sflag [#allocation3], %s205
        %s207 = sand.u32 %s29, 1
        %s208 = smul.addr %s207, 576
        %s209 = scalar_lea.vmem [#allocation2], %s208
        %p210 = pneg %p42
        %p211 = pneg %p39
        %p212 = pneg %p63
        %p213 = pneg %p60
        %p214 = pneg %p84
        %p215 = pneg %p81
        %p216 = pneg %p110
        %p217 = pneg %p107
        %s218 = sand.u32 %s97, 1
        %s219 = scalar_lea.sflag [#allocation4], %s218
        %s220 = sand.u32 %s97, 1
        %s221 = smul.addr %s220, 128
        %s222 = scalar_lea.vmem [#allocation8], %s221
        %s223 = smul.u32 16, %s21
        %s224 = smul.u32 16, %s21
        %v225 = vld [vmem:[%s189] sm:$0xff]
        %v226 = vld [vmem:[%s189 + $0x8] sm:$0xff]
        %v227 = vld [vmem:[%s189 + $0x10] sm:$0xff]
        %v228 = vld [vmem:[%s189 + $0x18] sm:$0xff]
        %v229 = vld [vmem:[%s189 + $0x20] sm:$0xf]
        %v230 = vld [vmem:[%s189 + $0x24] sm:$0xff]
        %v231 = vld [vmem:[%s189 + $0x2c] sm:$0xff]
        %v232 = vld [vmem:[%s189 + $0x34] sm:$0xff]
        %v233 = vld [vmem:[%s189 + $0x3c] sm:$0xff]
        %v234 = vld [vmem:[%s189 + $0x44] sm:$0xf]
        %v235 = vld [vmem:[%s189 + $0x48] sm:$0xff]
        %v236 = vld [vmem:[%s189 + $0x50] sm:$0xff]
        %v237 = vld [vmem:[%s189 + $0x58] sm:$0xff]
        %v238 = vld [vmem:[%s189 + $0x60] sm:$0xff]
        %v239 = vld [vmem:[%s189 + $0x68] sm:$0xf]
        %v240 = vld [vmem:[%s189 + $0x6c] sm:$0xff]
        %v241 = vld [vmem:[%s189 + $0x74] sm:$0xff]
        %v242 = vld [vmem:[%s189 + $0x7c] sm:$0xff]
        %v243 = vld [vmem:[%s189 + $0x84] sm:$0xff]
        %v244 = vld [vmem:[%s189 + $0x8c] sm:$0xf]
        %v245 = vld [vmem:[%s189 + $0x90] sm:$0xff]
        %v246 = vld [vmem:[%s189 + $0x98] sm:$0xff]
        %v247 = vld [vmem:[%s189 + $0xa0] sm:$0xff]
        %v248 = vld [vmem:[%s189 + $0xa8] sm:$0xff]
        %v249 = vld [vmem:[%s189 + $0xb0] sm:$0xf]
        %v250 = vld [vmem:[%s189 + $0xb4] sm:$0xff]
        %v251 = vld [vmem:[%s189 + $0xbc] sm:$0xff]
        %v252 = vld [vmem:[%s189 + $0xc4] sm:$0xff]
        %v253 = vld [vmem:[%s189 + $0xcc] sm:$0xff]
        %v254 = vld [vmem:[%s189 + $0xd4] sm:$0xf]
        %v255 = vld [vmem:[%s189 + $0xd8] sm:$0xff]
        %v256 = vld [vmem:[%s189 + $0xe0] sm:$0xff]
        %v257 = vld [vmem:[%s189 + $0xe8] sm:$0xff]
        %v258 = vld [vmem:[%s189 + $0xf0] sm:$0xff]
        %v259 = vld [vmem:[%s189 + $0xf8] sm:$0xf]
        %v260 = vld [vmem:[%s189 + $0xfc] sm:$0xff]
        %v261 = vld [vmem:[%s189 + $0x104] sm:$0xff]
        %v262 = vld [vmem:[%s189 + $0x10c] sm:$0xff]
        %v263 = vld [vmem:[%s189 + $0x114] sm:$0xff]
        %v264 = vld [vmem:[%s189 + $0x11c] sm:$0xf]
        %v265 = vld [vmem:[%s189 + $0x120] sm:$0xff]
        %v266 = vld [vmem:[%s189 + $0x128] sm:$0xff]
        %v267 = vld [vmem:[%s189 + $0x130] sm:$0xff]
        %v268 = vld [vmem:[%s189 + $0x138] sm:$0xff]
        %v269 = vld [vmem:[%s189 + $0x140] sm:$0xf]
        %v270 = vld [vmem:[%s189 + $0x144] sm:$0xff]
        %v271 = vld [vmem:[%s189 + $0x14c] sm:$0xff]
        %v272 = vld [vmem:[%s189 + $0x154] sm:$0xff]
        %v273 = vld [vmem:[%s189 + $0x15c] sm:$0xff]
        %v274 = vld [vmem:[%s189 + $0x164] sm:$0xf]
        %v275 = vld [vmem:[%s189 + $0x168] sm:$0xff]
        %v276 = vld [vmem:[%s189 + $0x170] sm:$0xff]
        %v277 = vld [vmem:[%s189 + $0x178] sm:$0xff]
        %v278 = vld [vmem:[%s189 + $0x180] sm:$0xff]
        %v279 = vld [vmem:[%s189 + $0x188] sm:$0xf]
        %v280 = vld [vmem:[%s189 + $0x18c] sm:$0xff]
        %v281 = vld [vmem:[%s189 + $0x194] sm:$0xff]
        %v282 = vld [vmem:[%s189 + $0x19c] sm:$0xff]
        %v283 = vld [vmem:[%s189 + $0x1a4] sm:$0xff]
        %v284 = vld [vmem:[%s189 + $0x1ac] sm:$0xf]
        %v285 = vld [vmem:[%s189 + $0x1b0] sm:$0xff]
        %v286 = vld [vmem:[%s189 + $0x1b8] sm:$0xff]
        %v287 = vld [vmem:[%s189 + $0x1c0] sm:$0xff]
        %v288 = vld [vmem:[%s189 + $0x1c8] sm:$0xff]
        %v289 = vld [vmem:[%s189 + $0x1d0] sm:$0xf]
        %v290 = vld [vmem:[%s189 + $0x1d4] sm:$0xff]
        %v291 = vld [vmem:[%s189 + $0x1dc] sm:$0xff]
        %v292 = vld [vmem:[%s189 + $0x1e4] sm:$0xff]
        %v293 = vld [vmem:[%s189 + $0x1ec] sm:$0xff]
        %v294 = vld [vmem:[%s189 + $0x1f4] sm:$0xf]
        %v295 = vld [vmem:[%s189 + $0x1f8] sm:$0xff]
        %v296 = vld [vmem:[%s189 + $0x200] sm:$0xff]
        %v297 = vld [vmem:[%s189 + $0x208] sm:$0xff]
        %v298 = vld [vmem:[%s189 + $0x210] sm:$0xff]
        %v299 = vld [vmem:[%s189 + $0x218] sm:$0xf]
        %v300 = vld [vmem:[%s189 + $0x21c] sm:$0xff]
        %v301 = vld [vmem:[%s189 + $0x224] sm:$0xff]
        %v302 = vld [vmem:[%s189 + $0x22c] sm:$0xff]
        %v303 = vld [vmem:[%s189 + $0x234] sm:$0xff]
        %v304 = vld [vmem:[%s189 + $0x23c] sm:$0xf]
        %v305 = vld [vmem:[#allocation5] sm:$0xf]
        %v306 = vld [vmem:[#allocation5 + $0x4] sm:$0xf]
        %v307 = vld [vmem:[#allocation5 + $0x8] sm:$0xf]
        %v308 = vld [vmem:[#allocation5 + $0xc] sm:$0xf]
        %v309 = vld [vmem:[#allocation5 + $0x10] sm:$0xf]
        %v310 = vld [vmem:[#allocation5 + $0x14] sm:$0xf]
        %v311 = vld [vmem:[#allocation5 + $0x18] sm:$0xf]
        %v312 = vld [vmem:[#allocation5 + $0x1c] sm:$0xf]
        %v313 = vld [vmem:[#allocation5 + $0x20] sm:$0xf]
        %v314 = vld [vmem:[#allocation5 + $0x24] sm:$0xf]
        %v315 = vld [vmem:[#allocation5 + $0x28] sm:$0xf]
        %v316 = vld [vmem:[#allocation5 + $0x2c] sm:$0xf]
        %v317 = vld [vmem:[#allocation5 + $0x30] sm:$0xf]
        %v318 = vld [vmem:[#allocation5 + $0x34] sm:$0xf]
        %v319 = vld [vmem:[#allocation5 + $0x38] sm:$0xf]
        %v320 = vld [vmem:[#allocation5 + $0x3c] sm:$0xf]
        %v321 = vld [vmem:[#allocation5 + $0x40] sm:$0xf]
        %v322 = vld [vmem:[#allocation5 + $0x44] sm:$0xf]
        %v323 = vld [vmem:[#allocation5 + $0x48] sm:$0xf]
        %v324 = vld [vmem:[#allocation5 + $0x4c] sm:$0xf]
        %v325 = vld [vmem:[#allocation5 + $0x50] sm:$0xf]
        %v326 = vld [vmem:[#allocation5 + $0x54] sm:$0xf]
        %v327 = vld [vmem:[#allocation5 + $0x58] sm:$0xf]
        %v328 = vld [vmem:[#allocation5 + $0x5c] sm:$0xf]
        %v329 = vld [vmem:[#allocation5 + $0x60] sm:$0xf]
        %v330 = vld [vmem:[#allocation5 + $0x64] sm:$0xf]
        %v331 = vld [vmem:[#allocation5 + $0x68] sm:$0xf]
        %v332 = vld [vmem:[#allocation5 + $0x6c] sm:$0xf]
        %v333 = vld [vmem:[#allocation5 + $0x70] sm:$0xf]
        %v334 = vld [vmem:[#allocation5 + $0x74] sm:$0xf]
        %v335 = vld [vmem:[#allocation5 + $0x78] sm:$0xf]
        %v336 = vld [vmem:[#allocation5 + $0x7c] sm:$0xf]
        %v337 = vld [vmem:[#allocation5 + $0x80] sm:$0xf]
        %v338 = vld [vmem:[#allocation5 + $0x84] sm:$0xf]
        %v339 = vld [vmem:[#allocation5 + $0x88] sm:$0xf]
        %v340 = vld [vmem:[#allocation5 + $0x8c] sm:$0xf]
        %v341 = vld [vmem:[#allocation5 + $0x90] sm:$0xf]
        %v342 = vld [vmem:[#allocation5 + $0x94] sm:$0xf]
        %v343 = vld [vmem:[#allocation5 + $0x98] sm:$0xf]
        %v344 = vld [vmem:[#allocation5 + $0x9c] sm:$0xf]
        %v345 = vld [vmem:[#allocation5 + $0xa0] sm:$0xf]
        %v346 = vld [vmem:[#allocation5 + $0xa4] sm:$0xf]
        %v347 = vld [vmem:[#allocation5 + $0xa8] sm:$0xf]
        %v348 = vld [vmem:[#allocation5 + $0xac] sm:$0xf]
        %v349 = vld [vmem:[#allocation5 + $0xb0] sm:$0xf]
        %v350 = vld [vmem:[#allocation5 + $0xb4] sm:$0xf]
        %v351 = vld [vmem:[#allocation5 + $0xb8] sm:$0xf]
        %v352 = vld [vmem:[#allocation5 + $0xbc] sm:$0xf]
        %v353 = vld [vmem:[#allocation5 + $0xc0] sm:$0xf]
        %v354 = vld [vmem:[#allocation5 + $0xc4] sm:$0xf]
        %v355 = vld [vmem:[#allocation5 + $0xc8] sm:$0xf]
        %v356 = vld [vmem:[#allocation5 + $0xcc] sm:$0xf]
        %v357 = vld [vmem:[#allocation5 + $0xd0] sm:$0xf]
        %v358 = vld [vmem:[#allocation5 + $0xd4] sm:$0xf]
        %v359 = vld [vmem:[#allocation5 + $0xd8] sm:$0xf]
        %v360 = vld [vmem:[#allocation5 + $0xdc] sm:$0xf]
        %v361 = vld [vmem:[#allocation5 + $0xe0] sm:$0xf]
        %v362 = vld [vmem:[#allocation5 + $0xe4] sm:$0xf]
        %v363 = vld [vmem:[#allocation5 + $0xe8] sm:$0xf]
        %v364 = vld [vmem:[#allocation5 + $0xec] sm:$0xf]
        %v365 = vld [vmem:[#allocation5 + $0xf0] sm:$0xf]
        %v366 = vld [vmem:[#allocation5 + $0xf4] sm:$0xf]
        %v367 = vld [vmem:[#allocation5 + $0xf8] sm:$0xf]
        %v368 = vld [vmem:[#allocation5 + $0xfc] sm:$0xf]
        %v369 = vld [vmem:[#allocation5 + $0x100] sm:$0xf]
        %v370 = vld [vmem:[#allocation5 + $0x104] sm:$0xf]
        %v371 = vld [vmem:[#allocation5 + $0x108] sm:$0xf]
        %v372 = vld [vmem:[#allocation5 + $0x10c] sm:$0xf]
        %v373 = vld [vmem:[#allocation5 + $0x110] sm:$0xf]
        %v374 = vld [vmem:[#allocation5 + $0x114] sm:$0xf]
        %v375 = vld [vmem:[#allocation5 + $0x118] sm:$0xf]
        %v376 = vld [vmem:[#allocation5 + $0x11c] sm:$0xf]
        %v377 = vld [vmem:[#allocation5 + $0x120] sm:$0xf]
        %v378 = vld [vmem:[#allocation5 + $0x124] sm:$0xf]
        %v379 = vld [vmem:[#allocation5 + $0x128] sm:$0xf]
        %v380 = vld [vmem:[#allocation5 + $0x12c] sm:$0xf]
        %v381 = vld [vmem:[#allocation5 + $0x130] sm:$0xf]
        %v382 = vld [vmem:[#allocation5 + $0x134] sm:$0xf]
        %v383 = vld [vmem:[#allocation5 + $0x138] sm:$0xf]
        %v384 = vld [vmem:[#allocation5 + $0x13c] sm:$0xf]
        %v385 = vld [vmem:[#allocation5 + $0x140] sm:$0xf]
        %v386 = vld [vmem:[#allocation5 + $0x144] sm:$0xf]
        %v387 = vld [vmem:[#allocation5 + $0x148] sm:$0xf]
        %v388 = vld [vmem:[#allocation5 + $0x14c] sm:$0xf]
        %v389 = vld [vmem:[#allocation5 + $0x150] sm:$0xf]
        %v390 = vld [vmem:[#allocation5 + $0x154] sm:$0xf]
        %v391 = vld [vmem:[#allocation5 + $0x158] sm:$0xf]
        %v392 = vld [vmem:[#allocation5 + $0x15c] sm:$0xf]
        %v393 = vld [vmem:[#allocation5 + $0x160] sm:$0xf]
        %v394 = vld [vmem:[#allocation5 + $0x164] sm:$0xf]
        %v395 = vld [vmem:[#allocation5 + $0x168] sm:$0xf]
        %v396 = vld [vmem:[#allocation5 + $0x16c] sm:$0xf]
        %v397 = vld [vmem:[#allocation5 + $0x170] sm:$0xf]
        %v398 = vld [vmem:[#allocation5 + $0x174] sm:$0xf]
        %v399 = vld [vmem:[#allocation5 + $0x178] sm:$0xf]
        %v400 = vld [vmem:[#allocation5 + $0x17c] sm:$0xf]
        %v401 = vld [vmem:[#allocation5 + $0x180] sm:$0xf]
        %v402 = vld [vmem:[#allocation5 + $0x184] sm:$0xf]
        %v403 = vld [vmem:[#allocation5 + $0x188] sm:$0xf]
        %v404 = vld [vmem:[#allocation5 + $0x18c] sm:$0xf]
        %v405 = vld [vmem:[#allocation5 + $0x190] sm:$0xf]
        %v406 = vld [vmem:[#allocation5 + $0x194] sm:$0xf]
        %v407 = vld [vmem:[#allocation5 + $0x198] sm:$0xf]
        %v408 = vld [vmem:[#allocation5 + $0x19c] sm:$0xf]
        %v409 = vld [vmem:[#allocation5 + $0x1a0] sm:$0xf]
        %v410 = vld [vmem:[#allocation5 + $0x1a4] sm:$0xf]
        %v411 = vld [vmem:[#allocation5 + $0x1a8] sm:$0xf]
        %v412 = vld [vmem:[#allocation5 + $0x1ac] sm:$0xf]
        %v413 = vld [vmem:[#allocation5 + $0x1b0] sm:$0xf]
        %v414 = vld [vmem:[#allocation5 + $0x1b4] sm:$0xf]
        %v415 = vld [vmem:[#allocation5 + $0x1b8] sm:$0xf]
        %v416 = vld [vmem:[#allocation5 + $0x1bc] sm:$0xf]
        %v417 = vld [vmem:[#allocation5 + $0x1c0] sm:$0xf]
        %v418 = vld [vmem:[#allocation5 + $0x1c4] sm:$0xf]
        %v419 = vld [vmem:[#allocation5 + $0x1c8] sm:$0xf]
        %v420 = vld [vmem:[#allocation5 + $0x1cc] sm:$0xf]
        %v421 = vld [vmem:[#allocation5 + $0x1d0] sm:$0xf]
        %v422 = vld [vmem:[#allocation5 + $0x1d4] sm:$0xf]
        %v423 = vld [vmem:[#allocation5 + $0x1d8] sm:$0xf]
        %v424 = vld [vmem:[#allocation5 + $0x1dc] sm:$0xf]
        %v425 = vld [vmem:[#allocation5 + $0x1e0] sm:$0xf]
        %v426 = vld [vmem:[#allocation5 + $0x1e4] sm:$0xf]
        %v427 = vld [vmem:[#allocation5 + $0x1e8] sm:$0xf]
        %v428 = vld [vmem:[#allocation5 + $0x1ec] sm:$0xf]
        %v429 = vld [vmem:[#allocation5 + $0x1f0] sm:$0xf]
        %v430 = vld [vmem:[#allocation5 + $0x1f4] sm:$0xf]
        %v431 = vld [vmem:[#allocation5 + $0x1f8] sm:$0xf]
        %v432 = vld [vmem:[#allocation5 + $0x1fc] sm:$0xf]
        %v433 = vld [vmem:[#allocation5 + $0x200] sm:$0xf]
        %v434 = vld [vmem:[#allocation5 + $0x204] sm:$0xf]
        %v435 = vld [vmem:[#allocation5 + $0x208] sm:$0xf]
        %v436 = vld [vmem:[#allocation5 + $0x20c] sm:$0xf]
        %v437 = vld [vmem:[#allocation5 + $0x210] sm:$0xf]
        %v438 = vld [vmem:[#allocation5 + $0x214] sm:$0xf]
        %v439 = vld [vmem:[#allocation5 + $0x218] sm:$0xf]
        %v440 = vld [vmem:[#allocation5 + $0x21c] sm:$0xf]
        %v441 = vld [vmem:[#allocation5 + $0x220] sm:$0xf]
        %v442 = vld [vmem:[#allocation5 + $0x224] sm:$0xf]
        %v443 = vld [vmem:[#allocation5 + $0x228] sm:$0xf]
        %v444 = vld [vmem:[#allocation5 + $0x22c] sm:$0xf]
        %v445 = vld [vmem:[#allocation5 + $0x230] sm:$0xf]
        %v446 = vld [vmem:[#allocation5 + $0x234] sm:$0xf]
        %v447 = vld [vmem:[#allocation5 + $0x238] sm:$0xf]
        %v448 = vld [vmem:[#allocation5 + $0x23c] sm:$0xf]
        %v449 = vld [vmem:[#allocation7] sm:$0x1]
        %v451 = vperm.slane %v449, 0
        %v533 = vunpack.c.l.b16 %v225
        %v534 = vunpack.c.h.b16 %v225
        %v535 = vunpack.c.l.b16 %v226
        %v536 = vunpack.c.h.b16 %v226
        %v537 = vunpack.c.l.b16 %v227
        %v538 = vunpack.c.h.b16 %v227
        %v539 = vunpack.c.l.b16 %v228
        %v540 = vunpack.c.h.b16 %v228
        %v541 = vunpack.c.l.b16 %v229
        %v542 = vunpack.c.l.b16 %v230
        %v543 = vunpack.c.h.b16 %v230
        %v544 = vunpack.c.l.b16 %v231
        %v545 = vunpack.c.h.b16 %v231
        %v546 = vunpack.c.l.b16 %v232
        %v547 = vunpack.c.h.b16 %v232
        %v548 = vunpack.c.l.b16 %v233
        %v549 = vunpack.c.h.b16 %v233
        %v550 = vunpack.c.l.b16 %v234
        %v551 = vunpack.c.l.b16 %v235
        %v552 = vunpack.c.h.b16 %v235
        %v553 = vunpack.c.l.b16 %v236
        %v554 = vunpack.c.h.b16 %v236
        %v555 = vunpack.c.l.b16 %v237
        %v556 = vunpack.c.h.b16 %v237
        %v557 = vunpack.c.l.b16 %v238
        %v558 = vunpack.c.h.b16 %v238
        %v559 = vunpack.c.l.b16 %v239
        %v560 = vunpack.c.l.b16 %v240
        %v561 = vunpack.c.h.b16 %v240
        %v562 = vunpack.c.l.b16 %v241
        %v563 = vunpack.c.h.b16 %v241
        %v564 = vunpack.c.l.b16 %v242
        %v565 = vunpack.c.h.b16 %v242
        %v566 = vunpack.c.l.b16 %v243
        %v567 = vunpack.c.h.b16 %v243
        %v568 = vunpack.c.l.b16 %v244
        %v569 = vunpack.c.l.b16 %v245
        %v570 = vunpack.c.h.b16 %v245
        %v571 = vunpack.c.l.b16 %v246
        %v572 = vunpack.c.h.b16 %v246
        %v573 = vunpack.c.l.b16 %v247
        %v574 = vunpack.c.h.b16 %v247
        %v575 = vunpack.c.l.b16 %v248
        %v576 = vunpack.c.h.b16 %v248
        %v577 = vunpack.c.l.b16 %v249
        %v578 = vunpack.c.l.b16 %v250
        %v579 = vunpack.c.h.b16 %v250
        %v580 = vunpack.c.l.b16 %v251
        %v581 = vunpack.c.h.b16 %v251
        %v582 = vunpack.c.l.b16 %v252
        %v583 = vunpack.c.h.b16 %v252
        %v584 = vunpack.c.l.b16 %v253
        %v585 = vunpack.c.h.b16 %v253
        %v586 = vunpack.c.l.b16 %v254
        %v587 = vunpack.c.l.b16 %v255
        %v588 = vunpack.c.h.b16 %v255
        %v589 = vunpack.c.l.b16 %v256
        %v590 = vunpack.c.h.b16 %v256
        %v591 = vunpack.c.l.b16 %v257
        %v592 = vunpack.c.h.b16 %v257
        %v593 = vunpack.c.l.b16 %v258
        %v594 = vunpack.c.h.b16 %v258
        %v595 = vunpack.c.l.b16 %v259
        %v596 = vunpack.c.l.b16 %v260
        %v597 = vunpack.c.h.b16 %v260
        %v598 = vunpack.c.l.b16 %v261
        %v599 = vunpack.c.h.b16 %v261
        %v600 = vunpack.c.l.b16 %v262
        %v601 = vunpack.c.h.b16 %v262
        %v602 = vunpack.c.l.b16 %v263
        %v603 = vunpack.c.h.b16 %v263
        %v604 = vunpack.c.l.b16 %v264
        %v605 = vunpack.c.l.b16 %v265
        %v606 = vunpack.c.h.b16 %v265
        %v607 = vunpack.c.l.b16 %v266
        %v608 = vunpack.c.h.b16 %v266
        %v609 = vunpack.c.l.b16 %v267
        %v610 = vunpack.c.h.b16 %v267
        %v611 = vunpack.c.l.b16 %v268
        %v612 = vunpack.c.h.b16 %v268
        %v613 = vunpack.c.l.b16 %v269
        %v614 = vunpack.c.l.b16 %v270
        %v615 = vunpack.c.h.b16 %v270
        %v616 = vunpack.c.l.b16 %v271
        %v617 = vunpack.c.h.b16 %v271
        %v618 = vunpack.c.l.b16 %v272
        %v619 = vunpack.c.h.b16 %v272
        %v620 = vunpack.c.l.b16 %v273
        %v621 = vunpack.c.h.b16 %v273
        %v622 = vunpack.c.l.b16 %v274
        %v623 = vunpack.c.l.b16 %v275
        %v624 = vunpack.c.h.b16 %v275
        %v625 = vunpack.c.l.b16 %v276
        %v626 = vunpack.c.h.b16 %v276
        %v627 = vunpack.c.l.b16 %v277
        %v628 = vunpack.c.h.b16 %v277
        %v629 = vunpack.c.l.b16 %v278
        %v630 = vunpack.c.h.b16 %v278
        %v631 = vunpack.c.l.b16 %v279
        %v632 = vunpack.c.l.b16 %v280
        %v633 = vunpack.c.h.b16 %v280
        %v634 = vunpack.c.l.b16 %v281
        %v635 = vunpack.c.h.b16 %v281
        %v636 = vunpack.c.l.b16 %v282
        %v637 = vunpack.c.h.b16 %v282
        %v638 = vunpack.c.l.b16 %v283
        %v639 = vunpack.c.h.b16 %v283
        %v640 = vunpack.c.l.b16 %v284
        %v641 = vunpack.c.l.b16 %v285
        %v642 = vunpack.c.h.b16 %v285
        %v643 = vunpack.c.l.b16 %v286
        %v644 = vunpack.c.h.b16 %v286
        %v645 = vunpack.c.l.b16 %v287
        %v646 = vunpack.c.h.b16 %v287
        %v647 = vunpack.c.l.b16 %v288
        %v648 = vunpack.c.h.b16 %v288
        %v649 = vunpack.c.l.b16 %v289
        %v650 = vunpack.c.l.b16 %v290
        %v651 = vunpack.c.h.b16 %v290
        %v652 = vunpack.c.l.b16 %v291
        %v653 = vunpack.c.h.b16 %v291
        %v654 = vunpack.c.l.b16 %v292
        %v655 = vunpack.c.h.b16 %v292
        %v656 = vunpack.c.l.b16 %v293
        %v657 = vunpack.c.h.b16 %v293
        %v658 = vunpack.c.l.b16 %v294
        %v659 = vunpack.c.l.b16 %v295
        %v660 = vunpack.c.h.b16 %v295
        %v661 = vunpack.c.l.b16 %v296
        %v662 = vunpack.c.h.b16 %v296
        %v663 = vunpack.c.l.b16 %v297
        %v664 = vunpack.c.h.b16 %v297
        %v665 = vunpack.c.l.b16 %v298
        %v666 = vunpack.c.h.b16 %v298
        %v667 = vunpack.c.l.b16 %v299
        %v668 = vunpack.c.l.b16 %v300
        %v669 = vunpack.c.h.b16 %v300
        %v670 = vunpack.c.l.b16 %v301
        %v671 = vunpack.c.h.b16 %v301
        %v672 = vunpack.c.l.b16 %v302
        %v673 = vunpack.c.h.b16 %v302
        %v674 = vunpack.c.l.b16 %v303
        %v675 = vunpack.c.h.b16 %v303
        %v676 = vunpack.c.l.b16 %v304
        %v677 = vpack.c.b16 %v542, %v533
        %v678 = vpack.c.b16 %v543, %v534
        %v679 = vpack.c.b16 %v544, %v535
        %v680 = vpack.c.b16 %v545, %v536
        %v681 = vpack.c.b16 %v546, %v537
        %v682 = vpack.c.b16 %v547, %v538
        %v683 = vpack.c.b16 %v548, %v539
        %v684 = vpack.c.b16 %v549, %v540
        %v685 = vpack.c.b16 %v550, %v541
        %v686 = vpack.c.b16 %v560, %v551
        %v687 = vpack.c.b16 %v561, %v552
        %v688 = vpack.c.b16 %v562, %v553
        %v689 = vpack.c.b16 %v563, %v554
        %v690 = vpack.c.b16 %v564, %v555
        %v691 = vpack.c.b16 %v565, %v556
        %v692 = vpack.c.b16 %v566, %v557
        %v693 = vpack.c.b16 %v567, %v558
        %v694 = vpack.c.b16 %v568, %v559
        %v695 = vpack.c.b16 %v578, %v569
        %v696 = vpack.c.b16 %v579, %v570
        %v697 = vpack.c.b16 %v580, %v571
        %v698 = vpack.c.b16 %v581, %v572
        %v699 = vpack.c.b16 %v582, %v573
        %v700 = vpack.c.b16 %v583, %v574
        %v701 = vpack.c.b16 %v584, %v575
        %v702 = vpack.c.b16 %v585, %v576
        %v703 = vpack.c.b16 %v586, %v577
        %v704 = vpack.c.b16 %v596, %v587
        %v705 = vpack.c.b16 %v597, %v588
        %v706 = vpack.c.b16 %v598, %v589
        %v707 = vpack.c.b16 %v599, %v590
        %v708 = vpack.c.b16 %v600, %v591
        %v709 = vpack.c.b16 %v601, %v592
        %v710 = vpack.c.b16 %v602, %v593
        %v711 = vpack.c.b16 %v603, %v594
        %v712 = vpack.c.b16 %v604, %v595
        %v713 = vpack.c.b16 %v614, %v605
        %v714 = vpack.c.b16 %v615, %v606
        %v715 = vpack.c.b16 %v616, %v607
        %v716 = vpack.c.b16 %v617, %v608
        %v717 = vpack.c.b16 %v618, %v609
        %v718 = vpack.c.b16 %v619, %v610
        %v719 = vpack.c.b16 %v620, %v611
        %v720 = vpack.c.b16 %v621, %v612
        %v721 = vpack.c.b16 %v622, %v613
        %v722 = vpack.c.b16 %v632, %v623
        %v723 = vpack.c.b16 %v633, %v624
        %v724 = vpack.c.b16 %v634, %v625
        %v725 = vpack.c.b16 %v635, %v626
        %v726 = vpack.c.b16 %v636, %v627
        %v727 = vpack.c.b16 %v637, %v628
        %v728 = vpack.c.b16 %v638, %v629
        %v729 = vpack.c.b16 %v639, %v630
        %v730 = vpack.c.b16 %v640, %v631
        %v731 = vpack.c.b16 %v650, %v641
        %v732 = vpack.c.b16 %v651, %v642
        %v733 = vpack.c.b16 %v652, %v643
        %v734 = vpack.c.b16 %v653, %v644
        %v735 = vpack.c.b16 %v654, %v645
        %v736 = vpack.c.b16 %v655, %v646
        %v737 = vpack.c.b16 %v656, %v647
        %v738 = vpack.c.b16 %v657, %v648
        %v739 = vpack.c.b16 %v658, %v649
        %v740 = vpack.c.b16 %v668, %v659
        %v741 = vpack.c.b16 %v669, %v660
        %v742 = vpack.c.b16 %v670, %v661
        %v743 = vpack.c.b16 %v671, %v662
        %v744 = vpack.c.b16 %v672, %v663
        %v745 = vpack.c.b16 %v673, %v664
        %v746 = vpack.c.b16 %v674, %v665
        %v747 = vpack.c.b16 %v675, %v666
        %v748 = vpack.c.b16 %v676, %v667
        %v965 = vunpack.c.l.b16 %v305
        %v966 = vunpack.c.l.b16 %v306
        %v967 = vunpack.c.l.b16 %v307
        %v968 = vunpack.c.l.b16 %v308
        %v969 = vunpack.c.l.b16 %v309
        %v970 = vunpack.c.l.b16 %v310
        %v971 = vunpack.c.l.b16 %v311
        %v972 = vunpack.c.l.b16 %v312
        %v973 = vunpack.c.l.b16 %v313
        %v974 = vunpack.c.l.b16 %v314
        %v975 = vunpack.c.l.b16 %v315
        %v976 = vunpack.c.l.b16 %v316
        %v977 = vunpack.c.l.b16 %v317
        %v978 = vunpack.c.l.b16 %v318
        %v979 = vunpack.c.l.b16 %v319
        %v980 = vunpack.c.l.b16 %v320
        %v981 = vunpack.c.l.b16 %v321
        %v982 = vunpack.c.l.b16 %v322
        %v983 = vunpack.c.l.b16 %v323
        %v984 = vunpack.c.l.b16 %v324
        %v985 = vunpack.c.l.b16 %v325
        %v986 = vunpack.c.l.b16 %v326
        %v987 = vunpack.c.l.b16 %v327
        %v988 = vunpack.c.l.b16 %v328
        %v989 = vunpack.c.l.b16 %v329
        %v990 = vunpack.c.l.b16 %v330
        %v991 = vunpack.c.l.b16 %v331
        %v992 = vunpack.c.l.b16 %v332
        %v993 = vunpack.c.l.b16 %v333
        %v994 = vunpack.c.l.b16 %v334
        %v995 = vunpack.c.l.b16 %v335
        %v996 = vunpack.c.l.b16 %v336
        %v997 = vunpack.c.l.b16 %v337
        %v998 = vunpack.c.l.b16 %v338
        %v999 = vunpack.c.l.b16 %v339
        %v1000 = vunpack.c.l.b16 %v340
        %v1001 = vunpack.c.l.b16 %v341
        %v1002 = vunpack.c.l.b16 %v342
        %v1003 = vunpack.c.l.b16 %v343
        %v1004 = vunpack.c.l.b16 %v344
        %v1005 = vunpack.c.l.b16 %v345
        %v1006 = vunpack.c.l.b16 %v346
        %v1007 = vunpack.c.l.b16 %v347
        %v1008 = vunpack.c.l.b16 %v348
        %v1009 = vunpack.c.l.b16 %v349
        %v1010 = vunpack.c.l.b16 %v350
        %v1011 = vunpack.c.l.b16 %v351
        %v1012 = vunpack.c.l.b16 %v352
        %v1013 = vunpack.c.l.b16 %v353
        %v1014 = vunpack.c.l.b16 %v354
        %v1015 = vunpack.c.l.b16 %v355
        %v1016 = vunpack.c.l.b16 %v356
        %v1017 = vunpack.c.l.b16 %v357
        %v1018 = vunpack.c.l.b16 %v358
        %v1019 = vunpack.c.l.b16 %v359
        %v1020 = vunpack.c.l.b16 %v360
        %v1021 = vunpack.c.l.b16 %v361
        %v1022 = vunpack.c.l.b16 %v362
        %v1023 = vunpack.c.l.b16 %v363
        %v1024 = vunpack.c.l.b16 %v364
        %v1025 = vunpack.c.l.b16 %v365
        %v1026 = vunpack.c.l.b16 %v366
        %v1027 = vunpack.c.l.b16 %v367
        %v1028 = vunpack.c.l.b16 %v368
        %v1029 = vunpack.c.l.b16 %v369
        %v1030 = vunpack.c.l.b16 %v370
        %v1031 = vunpack.c.l.b16 %v371
        %v1032 = vunpack.c.l.b16 %v372
        %v1033 = vunpack.c.l.b16 %v373
        %v1034 = vunpack.c.l.b16 %v374
        %v1035 = vunpack.c.l.b16 %v375
        %v1036 = vunpack.c.l.b16 %v376
        %v1037 = vunpack.c.l.b16 %v377
        %v1038 = vunpack.c.l.b16 %v378
        %v1039 = vunpack.c.l.b16 %v379
        %v1040 = vunpack.c.l.b16 %v380
        %v1041 = vunpack.c.l.b16 %v381
        %v1042 = vunpack.c.l.b16 %v382
        %v1043 = vunpack.c.l.b16 %v383
        %v1044 = vunpack.c.l.b16 %v384
        %v1045 = vunpack.c.l.b16 %v385
        %v1046 = vunpack.c.l.b16 %v386
        %v1047 = vunpack.c.l.b16 %v387
        %v1048 = vunpack.c.l.b16 %v388
        %v1049 = vunpack.c.l.b16 %v389
        %v1050 = vunpack.c.l.b16 %v390
        %v1051 = vunpack.c.l.b16 %v391
        %v1052 = vunpack.c.l.b16 %v392
        %v1053 = vunpack.c.l.b16 %v393
        %v1054 = vunpack.c.l.b16 %v394
        %v1055 = vunpack.c.l.b16 %v395
        %v1056 = vunpack.c.l.b16 %v396
        %v1057 = vunpack.c.l.b16 %v397
        %v1058 = vunpack.c.l.b16 %v398
        %v1059 = vunpack.c.l.b16 %v399
        %v1060 = vunpack.c.l.b16 %v400
        %v1061 = vunpack.c.l.b16 %v401
        %v1062 = vunpack.c.l.b16 %v402
        %v1063 = vunpack.c.l.b16 %v403
        %v1064 = vunpack.c.l.b16 %v404
        %v1065 = vunpack.c.l.b16 %v405
        %v1066 = vunpack.c.l.b16 %v406
        %v1067 = vunpack.c.l.b16 %v407
        %v1068 = vunpack.c.l.b16 %v408
        %v1069 = vunpack.c.l.b16 %v409
        %v1070 = vunpack.c.l.b16 %v410
        %v1071 = vunpack.c.l.b16 %v411
        %v1072 = vunpack.c.l.b16 %v412
        %v1073 = vunpack.c.l.b16 %v413
        %v1074 = vunpack.c.l.b16 %v414
        %v1075 = vunpack.c.l.b16 %v415
        %v1076 = vunpack.c.l.b16 %v416
        %v1077 = vunpack.c.l.b16 %v417
        %v1078 = vunpack.c.l.b16 %v418
        %v1079 = vunpack.c.l.b16 %v419
        %v1080 = vunpack.c.l.b16 %v420
        %v1081 = vunpack.c.l.b16 %v421
        %v1082 = vunpack.c.l.b16 %v422
        %v1083 = vunpack.c.l.b16 %v423
        %v1084 = vunpack.c.l.b16 %v424
        %v1085 = vunpack.c.l.b16 %v425
        %v1086 = vunpack.c.l.b16 %v426
        %v1087 = vunpack.c.l.b16 %v427
        %v1088 = vunpack.c.l.b16 %v428
        %v1089 = vunpack.c.l.b16 %v429
        %v1090 = vunpack.c.l.b16 %v430
        %v1091 = vunpack.c.l.b16 %v431
        %v1092 = vunpack.c.l.b16 %v432
        %v1093 = vunpack.c.l.b16 %v433
        %v1094 = vunpack.c.l.b16 %v434
        %v1095 = vunpack.c.l.b16 %v435
        %v1096 = vunpack.c.l.b16 %v436
        %v1097 = vunpack.c.l.b16 %v437
        %v1098 = vunpack.c.l.b16 %v438
        %v1099 = vunpack.c.l.b16 %v439
        %v1100 = vunpack.c.l.b16 %v440
        %v1101 = vunpack.c.l.b16 %v441
        %v1102 = vunpack.c.l.b16 %v442
        %v1103 = vunpack.c.l.b16 %v443
        %v1104 = vunpack.c.l.b16 %v444
        %v1105 = vunpack.c.l.b16 %v445
        %v1106 = vunpack.c.l.b16 %v446
        %v1107 = vunpack.c.l.b16 %v447
        %v1108 = vunpack.c.l.b16 %v448
        %v1109 = vpack.c.b16 %v966, %v965
        %v1110 = vpack.c.b16 %v968, %v967
        %v1111 = vpack.c.b16 %v970, %v969
        %v1112 = vpack.c.b16 %v972, %v971
        %v1113 = vpack.c.b16 %v974, %v973
        %v1114 = vpack.c.b16 %v976, %v975
        %v1115 = vpack.c.b16 %v978, %v977
        %v1116 = vpack.c.b16 %v980, %v979
        %v1117 = vpack.c.b16 %v982, %v981
        %v1118 = vpack.c.b16 %v984, %v983
        %v1119 = vpack.c.b16 %v986, %v985
        %v1120 = vpack.c.b16 %v988, %v987
        %v1121 = vpack.c.b16 %v990, %v989
        %v1122 = vpack.c.b16 %v992, %v991
        %v1123 = vpack.c.b16 %v994, %v993
        %v1124 = vpack.c.b16 %v996, %v995
        %v1125 = vpack.c.b16 %v998, %v997
        %v1126 = vpack.c.b16 %v1000, %v999
        %v1127 = vpack.c.b16 %v1002, %v1001
        %v1128 = vpack.c.b16 %v1004, %v1003
        %v1129 = vpack.c.b16 %v1006, %v1005
        %v1130 = vpack.c.b16 %v1008, %v1007
        %v1131 = vpack.c.b16 %v1010, %v1009
        %v1132 = vpack.c.b16 %v1012, %v1011
        %v1133 = vpack.c.b16 %v1014, %v1013
        %v1134 = vpack.c.b16 %v1016, %v1015
        %v1135 = vpack.c.b16 %v1018, %v1017
        %v1136 = vpack.c.b16 %v1020, %v1019
        %v1137 = vpack.c.b16 %v1022, %v1021
        %v1138 = vpack.c.b16 %v1024, %v1023
        %v1139 = vpack.c.b16 %v1026, %v1025
        %v1140 = vpack.c.b16 %v1028, %v1027
        %v1141 = vpack.c.b16 %v1030, %v1029
        %v1142 = vpack.c.b16 %v1032, %v1031
        %v1143 = vpack.c.b16 %v1034, %v1033
        %v1144 = vpack.c.b16 %v1036, %v1035
        %v1145 = vpack.c.b16 %v1038, %v1037
        %v1146 = vpack.c.b16 %v1040, %v1039
        %v1147 = vpack.c.b16 %v1042, %v1041
        %v1148 = vpack.c.b16 %v1044, %v1043
        %v1149 = vpack.c.b16 %v1046, %v1045
        %v1150 = vpack.c.b16 %v1048, %v1047
        %v1151 = vpack.c.b16 %v1050, %v1049
        %v1152 = vpack.c.b16 %v1052, %v1051
        %v1153 = vpack.c.b16 %v1054, %v1053
        %v1154 = vpack.c.b16 %v1056, %v1055
        %v1155 = vpack.c.b16 %v1058, %v1057
        %v1156 = vpack.c.b16 %v1060, %v1059
        %v1157 = vpack.c.b16 %v1062, %v1061
        %v1158 = vpack.c.b16 %v1064, %v1063
        %v1159 = vpack.c.b16 %v1066, %v1065
        %v1160 = vpack.c.b16 %v1068, %v1067
        %v1161 = vpack.c.b16 %v1070, %v1069
        %v1162 = vpack.c.b16 %v1072, %v1071
        %v1163 = vpack.c.b16 %v1074, %v1073
        %v1164 = vpack.c.b16 %v1076, %v1075
        %v1165 = vpack.c.b16 %v1078, %v1077
        %v1166 = vpack.c.b16 %v1080, %v1079
        %v1167 = vpack.c.b16 %v1082, %v1081
        %v1168 = vpack.c.b16 %v1084, %v1083
        %v1169 = vpack.c.b16 %v1086, %v1085
        %v1170 = vpack.c.b16 %v1088, %v1087
        %v1171 = vpack.c.b16 %v1090, %v1089
        %v1172 = vpack.c.b16 %v1092, %v1091
        %v1173 = vpack.c.b16 %v1094, %v1093
        %v1174 = vpack.c.b16 %v1096, %v1095
        %v1175 = vpack.c.b16 %v1098, %v1097
        %v1176 = vpack.c.b16 %v1100, %v1099
        %v1177 = vpack.c.b16 %v1102, %v1101
        %v1178 = vpack.c.b16 %v1104, %v1103
        %v1179 = vpack.c.b16 %v1106, %v1105
        %v1180 = vpack.c.b16 %v1108, %v1107
        %1253 = vmatpush.bf16.msra.mxu0 %v1116
        %1254 = vmatpush.bf16.msra.mxu0 %v1115
        %1255 = vmatpush.bf16.msra.mxu0 %v1114
        %1256 = vmatpush.bf16.msra.mxu0 %v1113
        %1257 = vmatpush.bf16.msra.mxu0 %v1112
        %1258 = vmatpush.bf16.msra.mxu0 %v1111
        %1259 = vmatpush.bf16.msra.mxu0 %v1110
        %1260 = vmatpush.bf16.msra.mxu0 %v1109
        %1261 = vmatmul.bf16.gmra.mxu0 %v677
        %v1262 = vpop.f32.mrf.mxu0
        %v1263 = vadd.f32 %v451, %v1262
        %v1264 = vpop.f32.mrf.mxu0
        %v1265 = vadd.f32 %v451, %v1264
        %1266 = vmatmul.bf16.gmra.mxu0 %v686
        %v1267 = vpop.f32.mrf.mxu0
        %v1268 = vadd.f32 %v451, %v1267
        %v1269 = vpop.f32.mrf.mxu0
        %v1270 = vadd.f32 %v451, %v1269
        %1271 = vmatmul.bf16.gmra.mxu0 %v695
        %v1272 = vpop.f32.mrf.mxu0
        %v1273 = vadd.f32 %v451, %v1272
        %v1274 = vpop.f32.mrf.mxu0
        %v1275 = vadd.f32 %v451, %v1274
        %1276 = vmatmul.bf16.gmra.mxu0 %v704
        %v1277 = vpop.f32.mrf.mxu0
        %v1278 = vadd.f32 %v451, %v1277
        %v1279 = vpop.f32.mrf.mxu0
        %v1280 = vadd.f32 %v451, %v1279
        %1281 = vmatmul.bf16.gmra.mxu0 %v713
        %v1282 = vpop.f32.mrf.mxu0
        %v1283 = vadd.f32 %v451, %v1282
        %v1284 = vpop.f32.mrf.mxu0
        %v1285 = vadd.f32 %v451, %v1284
        %1286 = vmatmul.bf16.gmra.mxu0 %v722
        %v1287 = vpop.f32.mrf.mxu0
        %v1288 = vadd.f32 %v451, %v1287
        %v1289 = vpop.f32.mrf.mxu0
        %v1290 = vadd.f32 %v451, %v1289
        %1291 = vmatmul.bf16.gmra.mxu0 %v731
        %v1292 = vpop.f32.mrf.mxu0
        %v1293 = vadd.f32 %v451, %v1292
        %v1294 = vpop.f32.mrf.mxu0
        %v1295 = vadd.f32 %v451, %v1294
        %1296 = vmatmul.bf16.gmra.mxu0 %v740
        %v1297 = vpop.f32.mrf.mxu0
        %v1298 = vadd.f32 %v451, %v1297
        %v1299 = vpop.f32.mrf.mxu0
        %v1300 = vadd.f32 %v451, %v1299
        %1301 = vdwg.mxu0
        %1302 = vmatpush.bf16.msra.mxu0 %v1124
        %1303 = vmatpush.bf16.msra.mxu0 %v1123
        %1304 = vmatpush.bf16.msra.mxu0 %v1122
        %1305 = vmatpush.bf16.msra.mxu0 %v1121
        %1306 = vmatpush.bf16.msra.mxu0 %v1120
        %1307 = vmatpush.bf16.msra.mxu0 %v1119
        %1308 = vmatpush.bf16.msra.mxu0 %v1118
        %1309 = vmatpush.bf16.msra.mxu0 %v1117
        %1310 = vmatmul.bf16.gmra.mxu0 %v678
        %v1311 = vpop.f32.mrf.mxu0
        %v1312 = vadd.f32 %v1263, %v1311
        %v1313 = vpop.f32.mrf.mxu0
        %v1314 = vadd.f32 %v1265, %v1313
        %1315 = vmatmul.bf16.gmra.mxu0 %v687
        %v1316 = vpop.f32.mrf.mxu0
        %v1317 = vadd.f32 %v1268, %v1316
        %v1318 = vpop.f32.mrf.mxu0
        %v1319 = vadd.f32 %v1270, %v1318
        %1320 = vmatmul.bf16.gmra.mxu0 %v696
        %v1321 = vpop.f32.mrf.mxu0
        %v1322 = vadd.f32 %v1273, %v1321
        %v1323 = vpop.f32.mrf.mxu0
        %v1324 = vadd.f32 %v1275, %v1323
        %1325 = vmatmul.bf16.gmra.mxu0 %v705
        %v1326 = vpop.f32.mrf.mxu0
        %v1327 = vadd.f32 %v1278, %v1326
        %v1328 = vpop.f32.mrf.mxu0
        %v1329 = vadd.f32 %v1280, %v1328
        %1330 = vmatmul.bf16.gmra.mxu0 %v714
        %v1331 = vpop.f32.mrf.mxu0
        %v1332 = vadd.f32 %v1283, %v1331
        %v1333 = vpop.f32.mrf.mxu0
        %v1334 = vadd.f32 %v1285, %v1333
        %1335 = vmatmul.bf16.gmra.mxu0 %v723
        %v1336 = vpop.f32.mrf.mxu0
        %v1337 = vadd.f32 %v1288, %v1336
        %v1338 = vpop.f32.mrf.mxu0
        %v1339 = vadd.f32 %v1290, %v1338
        %1340 = vmatmul.bf16.gmra.mxu0 %v732
        %v1341 = vpop.f32.mrf.mxu0
        %v1342 = vadd.f32 %v1293, %v1341
        %v1343 = vpop.f32.mrf.mxu0
        %v1344 = vadd.f32 %v1295, %v1343
        %1345 = vmatmul.bf16.gmra.mxu0 %v741
        %v1346 = vpop.f32.mrf.mxu0
        %v1347 = vadd.f32 %v1298, %v1346
        %v1348 = vpop.f32.mrf.mxu0
        %v1349 = vadd.f32 %v1300, %v1348
        %1350 = vdwg.mxu0
        %1351 = vmatpush.bf16.msra.mxu0 %v1132
        %1352 = vmatpush.bf16.msra.mxu0 %v1131
        %1353 = vmatpush.bf16.msra.mxu0 %v1130
        %1354 = vmatpush.bf16.msra.mxu0 %v1129
        %1355 = vmatpush.bf16.msra.mxu0 %v1128
        %1356 = vmatpush.bf16.msra.mxu0 %v1127
        %1357 = vmatpush.bf16.msra.mxu0 %v1126
        %1358 = vmatpush.bf16.msra.mxu0 %v1125
        %1359 = vmatmul.bf16.gmra.mxu0 %v679
        %v1360 = vpop.f32.mrf.mxu0
        %v1361 = vadd.f32 %v1312, %v1360
        %v1362 = vpop.f32.mrf.mxu0
        %v1363 = vadd.f32 %v1314, %v1362
        %1364 = vmatmul.bf16.gmra.mxu0 %v688
        %v1365 = vpop.f32.mrf.mxu0
        %v1366 = vadd.f32 %v1317, %v1365
        %v1367 = vpop.f32.mrf.mxu0
        %v1368 = vadd.f32 %v1319, %v1367
        %1369 = vmatmul.bf16.gmra.mxu0 %v697
        %v1370 = vpop.f32.mrf.mxu0
        %v1371 = vadd.f32 %v1322, %v1370
        %v1372 = vpop.f32.mrf.mxu0
        %v1373 = vadd.f32 %v1324, %v1372
        %1374 = vmatmul.bf16.gmra.mxu0 %v706
        %v1375 = vpop.f32.mrf.mxu0
        %v1376 = vadd.f32 %v1327, %v1375
        %v1377 = vpop.f32.mrf.mxu0
        %v1378 = vadd.f32 %v1329, %v1377
        %1379 = vmatmul.bf16.gmra.mxu0 %v715
        %v1380 = vpop.f32.mrf.mxu0
        %v1381 = vadd.f32 %v1332, %v1380
        %v1382 = vpop.f32.mrf.mxu0
        %v1383 = vadd.f32 %v1334, %v1382
        %1384 = vmatmul.bf16.gmra.mxu0 %v724
        %v1385 = vpop.f32.mrf.mxu0
        %v1386 = vadd.f32 %v1337, %v1385
        %v1387 = vpop.f32.mrf.mxu0
        %v1388 = vadd.f32 %v1339, %v1387
        %1389 = vmatmul.bf16.gmra.mxu0 %v733
        %v1390 = vpop.f32.mrf.mxu0
        %v1391 = vadd.f32 %v1342, %v1390
        %v1392 = vpop.f32.mrf.mxu0
        %v1393 = vadd.f32 %v1344, %v1392
        %1394 = vmatmul.bf16.gmra.mxu0 %v742
        %v1395 = vpop.f32.mrf.mxu0
        %v1396 = vadd.f32 %v1347, %v1395
        %v1397 = vpop.f32.mrf.mxu0
        %v1398 = vadd.f32 %v1349, %v1397
        %1399 = vdwg.mxu0
        %1400 = vmatpush.bf16.msra.mxu0 %v1140
        %1401 = vmatpush.bf16.msra.mxu0 %v1139
        %1402 = vmatpush.bf16.msra.mxu0 %v1138
        %1403 = vmatpush.bf16.msra.mxu0 %v1137
        %1404 = vmatpush.bf16.msra.mxu0 %v1136
        %1405 = vmatpush.bf16.msra.mxu0 %v1135
        %1406 = vmatpush.bf16.msra.mxu0 %v1134
        %1407 = vmatpush.bf16.msra.mxu0 %v1133
        %1408 = vmatmul.bf16.gmra.mxu0 %v680
        %v1409 = vpop.f32.mrf.mxu0
        %v1410 = vadd.f32 %v1361, %v1409
        %v1411 = vpop.f32.mrf.mxu0
        %v1412 = vadd.f32 %v1363, %v1411
        %1413 = vmatmul.bf16.gmra.mxu0 %v689
        %v1414 = vpop.f32.mrf.mxu0
        %v1415 = vadd.f32 %v1366, %v1414
        %v1416 = vpop.f32.mrf.mxu0
        %v1417 = vadd.f32 %v1368, %v1416
        %1418 = vmatmul.bf16.gmra.mxu0 %v698
        %v1419 = vpop.f32.mrf.mxu0
        %v1420 = vadd.f32 %v1371, %v1419
        %v1421 = vpop.f32.mrf.mxu0
        %v1422 = vadd.f32 %v1373, %v1421
        %1423 = vmatmul.bf16.gmra.mxu0 %v707
        %v1424 = vpop.f32.mrf.mxu0
        %v1425 = vadd.f32 %v1376, %v1424
        %v1426 = vpop.f32.mrf.mxu0
        %v1427 = vadd.f32 %v1378, %v1426
        %1428 = vmatmul.bf16.gmra.mxu0 %v716
        %v1429 = vpop.f32.mrf.mxu0
        %v1430 = vadd.f32 %v1381, %v1429
        %v1431 = vpop.f32.mrf.mxu0
        %v1432 = vadd.f32 %v1383, %v1431
        %1433 = vmatmul.bf16.gmra.mxu0 %v725
        %v1434 = vpop.f32.mrf.mxu0
        %v1435 = vadd.f32 %v1386, %v1434
        %v1436 = vpop.f32.mrf.mxu0
        %v1437 = vadd.f32 %v1388, %v1436
        %1438 = vmatmul.bf16.gmra.mxu0 %v734
        %v1439 = vpop.f32.mrf.mxu0
        %v1440 = vadd.f32 %v1391, %v1439
        %v1441 = vpop.f32.mrf.mxu0
        %v1442 = vadd.f32 %v1393, %v1441
        %1443 = vmatmul.bf16.gmra.mxu0 %v743
        %v1444 = vpop.f32.mrf.mxu0
        %v1445 = vadd.f32 %v1396, %v1444
        %v1446 = vpop.f32.mrf.mxu0
        %v1447 = vadd.f32 %v1398, %v1446
        %1448 = vdwg.mxu0
        %1449 = vmatpush.bf16.msra.mxu0 %v1148
        %1450 = vmatpush.bf16.msra.mxu0 %v1147
        %1451 = vmatpush.bf16.msra.mxu0 %v1146
        %1452 = vmatpush.bf16.msra.mxu0 %v1145
        %1453 = vmatpush.bf16.msra.mxu0 %v1144
        %1454 = vmatpush.bf16.msra.mxu0 %v1143
        %1455 = vmatpush.bf16.msra.mxu0 %v1142
        %1456 = vmatpush.bf16.msra.mxu0 %v1141
        %1457 = vmatmul.bf16.gmra.mxu0 %v681
        %v1458 = vpop.f32.mrf.mxu0
        %v1459 = vadd.f32 %v1410, %v1458
        %v1460 = vpop.f32.mrf.mxu0
        %v1461 = vadd.f32 %v1412, %v1460
        %1462 = vmatmul.bf16.gmra.mxu0 %v690
        %v1463 = vpop.f32.mrf.mxu0
        %v1464 = vadd.f32 %v1415, %v1463
        %v1465 = vpop.f32.mrf.mxu0
        %v1466 = vadd.f32 %v1417, %v1465
        %1467 = vmatmul.bf16.gmra.mxu0 %v699
        %v1468 = vpop.f32.mrf.mxu0
        %v1469 = vadd.f32 %v1420, %v1468
        %v1470 = vpop.f32.mrf.mxu0
        %v1471 = vadd.f32 %v1422, %v1470
        %1472 = vmatmul.bf16.gmra.mxu0 %v708
        %v1473 = vpop.f32.mrf.mxu0
        %v1474 = vadd.f32 %v1425, %v1473
        %v1475 = vpop.f32.mrf.mxu0
        %v1476 = vadd.f32 %v1427, %v1475
        %1477 = vmatmul.bf16.gmra.mxu0 %v717
        %v1478 = vpop.f32.mrf.mxu0
        %v1479 = vadd.f32 %v1430, %v1478
        %v1480 = vpop.f32.mrf.mxu0
        %v1481 = vadd.f32 %v1432, %v1480
        %1482 = vmatmul.bf16.gmra.mxu0 %v726
        %v1483 = vpop.f32.mrf.mxu0
        %v1484 = vadd.f32 %v1435, %v1483
        %v1485 = vpop.f32.mrf.mxu0
        %v1486 = vadd.f32 %v1437, %v1485
        %1487 = vmatmul.bf16.gmra.mxu0 %v735
        %v1488 = vpop.f32.mrf.mxu0
        %v1489 = vadd.f32 %v1440, %v1488
        %v1490 = vpop.f32.mrf.mxu0
        %v1491 = vadd.f32 %v1442, %v1490
        %1492 = vmatmul.bf16.gmra.mxu0 %v744
        %v1493 = vpop.f32.mrf.mxu0
        %v1494 = vadd.f32 %v1445, %v1493
        %v1495 = vpop.f32.mrf.mxu0
        %v1496 = vadd.f32 %v1447, %v1495
        %1497 = vdwg.mxu0
        %1498 = vmatpush.bf16.msra.mxu0 %v1156
        %1499 = vmatpush.bf16.msra.mxu0 %v1155
        %1500 = vmatpush.bf16.msra.mxu0 %v1154
        %1501 = vmatpush.bf16.msra.mxu0 %v1153
        %1502 = vmatpush.bf16.msra.mxu0 %v1152
        %1503 = vmatpush.bf16.msra.mxu0 %v1151
        %1504 = vmatpush.bf16.msra.mxu0 %v1150
        %1505 = vmatpush.bf16.msra.mxu0 %v1149
        %1506 = vmatmul.bf16.gmra.mxu0 %v682
        %v1507 = vpop.f32.mrf.mxu0
        %v1508 = vadd.f32 %v1459, %v1507
        %v1509 = vpop.f32.mrf.mxu0
        %v1510 = vadd.f32 %v1461, %v1509
        %1511 = vmatmul.bf16.gmra.mxu0 %v691
        %v1512 = vpop.f32.mrf.mxu0
        %v1513 = vadd.f32 %v1464, %v1512
        %v1514 = vpop.f32.mrf.mxu0
        %v1515 = vadd.f32 %v1466, %v1514
        %1516 = vmatmul.bf16.gmra.mxu0 %v700
        %v1517 = vpop.f32.mrf.mxu0
        %v1518 = vadd.f32 %v1469, %v1517
        %v1519 = vpop.f32.mrf.mxu0
        %v1520 = vadd.f32 %v1471, %v1519
        %1521 = vmatmul.bf16.gmra.mxu0 %v709
        %v1522 = vpop.f32.mrf.mxu0
        %v1523 = vadd.f32 %v1474, %v1522
        %v1524 = vpop.f32.mrf.mxu0
        %v1525 = vadd.f32 %v1476, %v1524
        %1526 = vmatmul.bf16.gmra.mxu0 %v718
        %v1527 = vpop.f32.mrf.mxu0
        %v1528 = vadd.f32 %v1479, %v1527
        %v1529 = vpop.f32.mrf.mxu0
        %v1530 = vadd.f32 %v1481, %v1529
        %1531 = vmatmul.bf16.gmra.mxu0 %v727
        %v1532 = vpop.f32.mrf.mxu0
        %v1533 = vadd.f32 %v1484, %v1532
        %v1534 = vpop.f32.mrf.mxu0
        %v1535 = vadd.f32 %v1486, %v1534
        %1536 = vmatmul.bf16.gmra.mxu0 %v736
        %v1537 = vpop.f32.mrf.mxu0
        %v1538 = vadd.f32 %v1489, %v1537
        %v1539 = vpop.f32.mrf.mxu0
        %v1540 = vadd.f32 %v1491, %v1539
        %1541 = vmatmul.bf16.gmra.mxu0 %v745
        %v1542 = vpop.f32.mrf.mxu0
        %v1543 = vadd.f32 %v1494, %v1542
        %v1544 = vpop.f32.mrf.mxu0
        %v1545 = vadd.f32 %v1496, %v1544
        %1546 = vdwg.mxu0
        %1547 = vmatpush.bf16.msra.mxu0 %v1164
        %1548 = vmatpush.bf16.msra.mxu0 %v1163
        %1549 = vmatpush.bf16.msra.mxu0 %v1162
        %1550 = vmatpush.bf16.msra.mxu0 %v1161
        %1551 = vmatpush.bf16.msra.mxu0 %v1160
        %1552 = vmatpush.bf16.msra.mxu0 %v1159
        %1553 = vmatpush.bf16.msra.mxu0 %v1158
        %1554 = vmatpush.bf16.msra.mxu0 %v1157
        %1555 = vmatmul.bf16.gmra.mxu0 %v683
        %v1556 = vpop.f32.mrf.mxu0
        %v1557 = vadd.f32 %v1508, %v1556
        %v1558 = vpop.f32.mrf.mxu0
        %v1559 = vadd.f32 %v1510, %v1558
        %1560 = vmatmul.bf16.gmra.mxu0 %v692
        %v1561 = vpop.f32.mrf.mxu0
        %v1562 = vadd.f32 %v1513, %v1561
        %v1563 = vpop.f32.mrf.mxu0
        %v1564 = vadd.f32 %v1515, %v1563
        %1565 = vmatmul.bf16.gmra.mxu0 %v701
        %v1566 = vpop.f32.mrf.mxu0
        %v1567 = vadd.f32 %v1518, %v1566
        %v1568 = vpop.f32.mrf.mxu0
        %v1569 = vadd.f32 %v1520, %v1568
        %1570 = vmatmul.bf16.gmra.mxu0 %v710
        %v1571 = vpop.f32.mrf.mxu0
        %v1572 = vadd.f32 %v1523, %v1571
        %v1573 = vpop.f32.mrf.mxu0
        %v1574 = vadd.f32 %v1525, %v1573
        %1575 = vmatmul.bf16.gmra.mxu0 %v719
        %v1576 = vpop.f32.mrf.mxu0
        %v1577 = vadd.f32 %v1528, %v1576
        %v1578 = vpop.f32.mrf.mxu0
        %v1579 = vadd.f32 %v1530, %v1578
        %1580 = vmatmul.bf16.gmra.mxu0 %v728
        %v1581 = vpop.f32.mrf.mxu0
        %v1582 = vadd.f32 %v1533, %v1581
        %v1583 = vpop.f32.mrf.mxu0
        %v1584 = vadd.f32 %v1535, %v1583
        %1585 = vmatmul.bf16.gmra.mxu0 %v737
        %v1586 = vpop.f32.mrf.mxu0
        %v1587 = vadd.f32 %v1538, %v1586
        %v1588 = vpop.f32.mrf.mxu0
        %v1589 = vadd.f32 %v1540, %v1588
        %1590 = vmatmul.bf16.gmra.mxu0 %v746
        %v1591 = vpop.f32.mrf.mxu0
        %v1592 = vadd.f32 %v1543, %v1591
        %v1593 = vpop.f32.mrf.mxu0
        %v1594 = vadd.f32 %v1545, %v1593
        %1595 = vdwg.mxu0
        %1596 = vmatpush.bf16.msra.mxu0 %v1172
        %1597 = vmatpush.bf16.msra.mxu0 %v1171
        %1598 = vmatpush.bf16.msra.mxu0 %v1170
        %1599 = vmatpush.bf16.msra.mxu0 %v1169
        %1600 = vmatpush.bf16.msra.mxu0 %v1168
        %1601 = vmatpush.bf16.msra.mxu0 %v1167
        %1602 = vmatpush.bf16.msra.mxu0 %v1166
        %1603 = vmatpush.bf16.msra.mxu0 %v1165
        %1604 = vmatmul.bf16.gmra.mxu0 %v684
        %v1605 = vpop.f32.mrf.mxu0
        %v1606 = vadd.f32 %v1557, %v1605
        %v1607 = vpop.f32.mrf.mxu0
        %v1608 = vadd.f32 %v1559, %v1607
        %1609 = vmatmul.bf16.gmra.mxu0 %v693
        %v1610 = vpop.f32.mrf.mxu0
        %v1611 = vadd.f32 %v1562, %v1610
        %v1612 = vpop.f32.mrf.mxu0
        %v1613 = vadd.f32 %v1564, %v1612
        %1614 = vmatmul.bf16.gmra.mxu0 %v702
        %v1615 = vpop.f32.mrf.mxu0
        %v1616 = vadd.f32 %v1567, %v1615
        %v1617 = vpop.f32.mrf.mxu0
        %v1618 = vadd.f32 %v1569, %v1617
        %1619 = vmatmul.bf16.gmra.mxu0 %v711
        %v1620 = vpop.f32.mrf.mxu0
        %v1621 = vadd.f32 %v1572, %v1620
        %v1622 = vpop.f32.mrf.mxu0
        %v1623 = vadd.f32 %v1574, %v1622
        %1624 = vmatmul.bf16.gmra.mxu0 %v720
        %v1625 = vpop.f32.mrf.mxu0
        %v1626 = vadd.f32 %v1577, %v1625
        %v1627 = vpop.f32.mrf.mxu0
        %v1628 = vadd.f32 %v1579, %v1627
        %1629 = vmatmul.bf16.gmra.mxu0 %v729
        %v1630 = vpop.f32.mrf.mxu0
        %v1631 = vadd.f32 %v1582, %v1630
        %v1632 = vpop.f32.mrf.mxu0
        %v1633 = vadd.f32 %v1584, %v1632
        %1634 = vmatmul.bf16.gmra.mxu0 %v738
        %v1635 = vpop.f32.mrf.mxu0
        %v1636 = vadd.f32 %v1587, %v1635
        %v1637 = vpop.f32.mrf.mxu0
        %v1638 = vadd.f32 %v1589, %v1637
        %1639 = vmatmul.bf16.gmra.mxu0 %v747
        %v1640 = vpop.f32.mrf.mxu0
        %v1641 = vadd.f32 %v1592, %v1640
        %v1642 = vpop.f32.mrf.mxu0
        %v1643 = vadd.f32 %v1594, %v1642
        %1644 = vdwg.mxu0
        %1645 = vmatpush.bf16.msra.mxu0 %v1180
        %1646 = vmatpush.bf16.msra.mxu0 %v1179
        %1647 = vmatpush.bf16.msra.mxu0 %v1178
        %1648 = vmatpush.bf16.msra.mxu0 %v1177
        %1649 = vmatpush.bf16.msra.mxu0 %v1176
        %1650 = vmatpush.bf16.msra.mxu0 %v1175
        %1651 = vmatpush.bf16.msra.mxu0 %v1174
        %1652 = vmatpush.bf16.msra.mxu0 %v1173
        %1653 = vmatmul.bf16.gmra.mxu0 %v685
        %v1654 = vpop.f32.mrf.mxu0
        %v1655 = vadd.f32 %v1606, %v1654
        %v1656 = vpop.f32.mrf.mxu0
        %v1657 = vadd.f32 %v1608, %v1656
        %1658 = vmatmul.bf16.gmra.mxu0 %v694
        %v1659 = vpop.f32.mrf.mxu0
        %v1660 = vadd.f32 %v1611, %v1659
        %v1661 = vpop.f32.mrf.mxu0
        %v1662 = vadd.f32 %v1613, %v1661
        %1663 = vmatmul.bf16.gmra.mxu0 %v703
        %v1664 = vpop.f32.mrf.mxu0
        %v1665 = vadd.f32 %v1616, %v1664
        %v1666 = vpop.f32.mrf.mxu0
        %v1667 = vadd.f32 %v1618, %v1666
        %1668 = vmatmul.bf16.gmra.mxu0 %v712
        %v1669 = vpop.f32.mrf.mxu0
        %v1670 = vadd.f32 %v1621, %v1669
        %v1671 = vpop.f32.mrf.mxu0
        %v1672 = vadd.f32 %v1623, %v1671
        %1673 = vmatmul.bf16.gmra.mxu0 %v721
        %v1674 = vpop.f32.mrf.mxu0
        %v1675 = vadd.f32 %v1626, %v1674
        %v1676 = vpop.f32.mrf.mxu0
        %v1677 = vadd.f32 %v1628, %v1676
        %1678 = vmatmul.bf16.gmra.mxu0 %v730
        %v1679 = vpop.f32.mrf.mxu0
        %v1680 = vadd.f32 %v1631, %v1679
        %v1681 = vpop.f32.mrf.mxu0
        %v1682 = vadd.f32 %v1633, %v1681
        %1683 = vmatmul.bf16.gmra.mxu0 %v739
        %v1684 = vpop.f32.mrf.mxu0
        %v1685 = vadd.f32 %v1636, %v1684
        %v1686 = vpop.f32.mrf.mxu0
        %v1687 = vadd.f32 %v1638, %v1686
        %1688 = vmatmul.bf16.gmra.mxu0 %v748
        %v1689 = vpop.f32.mrf.mxu0
        %v1690 = vadd.f32 %v1641, %v1689
        %v1691 = vpop.f32.mrf.mxu0
        %v1692 = vadd.f32 %v1643, %v1691
        %1693 = vdwg.mxu0
        %1694 = vst [vmem:[%s222] sm:$0xff] %v1655
        %1695 = vst [vmem:[%s222 + $0x8] sm:$0xff] %v1657
        %1696 = vst [vmem:[%s222 + $0x10] sm:$0xff] %v1660
        %1697 = vst [vmem:[%s222 + $0x18] sm:$0xff] %v1662
        %1698 = vst [vmem:[%s222 + $0x20] sm:$0xff] %v1665
        %1699 = vst [vmem:[%s222 + $0x28] sm:$0xff] %v1667
        %1700 = vst [vmem:[%s222 + $0x30] sm:$0xff] %v1670
        %1701 = vst [vmem:[%s222 + $0x38] sm:$0xff] %v1672
        %1702 = vst [vmem:[%s222 + $0x40] sm:$0xff] %v1675
        %1703 = vst [vmem:[%s222 + $0x48] sm:$0xff] %v1677
        %1704 = vst [vmem:[%s222 + $0x50] sm:$0xff] %v1680
        %1705 = vst [vmem:[%s222 + $0x58] sm:$0xff] %v1682
        %1706 = vst [vmem:[%s222 + $0x60] sm:$0xff] %v1685
        %1707 = vst [vmem:[%s222 + $0x68] sm:$0xff] %v1687
        %1708 = vst [vmem:[%s222 + $0x70] sm:$0xff] %v1690
        %1709 = vst [vmem:[%s222 + $0x78] sm:$0xff] %v1692
        %s1710 = sand.u32 %s97, 1
        %s1711 = scalar_lea.sflag [#allocation4], %s1710
        %s1712 = sand.u32 %s97, 1
        %s1713 = smul.addr %s1712, 128
        %s1714 = scalar_lea.vmem [#allocation8], %s1713
        // Predicated region
        $region45: #{tpu_custom_call.1} parent=31 // pred_check
          %p1715 = pneg %p107
        $region46: #{tpu_custom_call.1} parent=31 // pred_check_branch
          %1717 = sbr.rel (%p1715) target = $region48
        $region47: #{tpu_custom_call.1} parent=31 // pred_region
          %s1718 = smul.u32 16, %s21
          %1720 = vsyncadd %s1711, 0
          %s1721 = smul.addr %s1718, 8
          %s1722 = scalar_lea.hbm %s3, %s1721
          %s1723 = sshll.u32 %s1714, 4
          %s1724 = int_to_ptr.vmem [resolvable:$true] %s1723
          %s1725 = sshll.u32 %s1722, 4
          %s1726 = int_to_ptr.hbm [resolvable:$true] %s1725
          %1731 = dma.vmem_to_hbm [thread:$0]  %s1724, 2048, %s1726, %s1711, 128, 128, 8
        $region48: #{tpu_custom_call.1} parent=31 // pred_fallthru
          _
      $region32: #{tpu_custom_call.1} parent=5 // pred_fallthru
        _
      %p1732 = scmp.le.s32.totalorder 2, %s16
      // Predicated region
      $region49: #{tpu_custom_call.1} parent=5 // pred_check
        %p1733 = pneg %p1732
      $region50: #{tpu_custom_call.1} parent=5 // pred_check_branch
        %1735 = sbr.rel (%p1733) target = $region52
      $region51: #{tpu_custom_call.1} parent=5 // pred_region
        %s1736 = ssub.s32 %s16, 2
        // Predicated region
        $region53: #{tpu_custom_call.1} parent=51 // pred_check
          %p1737 = pneg %p113
        $region54: #{tpu_custom_call.1} parent=51 // pred_check_branch
          %1739 = sbr.rel (%p1737) target = $region56
        $region55: #{tpu_custom_call.1} parent=51 // pred_region
          %s1740 = sand.u32 %s98, 1
          %s1741 = scalar_lea.sflag [#allocation4], %s1740
          %s1742 = sand.u32 %s98, 1
          %s1743 = smul.addr %s1742, 128
          %s1744 = scalar_lea.vmem [#allocation8], %s1743
          %1746 = dma.done %s1741, 2048
        $region56: #{tpu_custom_call.1} parent=51 // pred_fallthru
          _
      $region52: #{tpu_custom_call.1} parent=5 // pred_fallthru
        _
    $region6: #{tpu_custom_call.1} parent=1 // loop_footer
      %s20 = sadd.s32 1, %s16
    $region7: #{tpu_custom_call.1} parent=1 // loop_footer_branch
      %15 = sbr.rel target = $region3
    $region8: #{tpu_custom_call.1} parent=1 // loop_exit
      _
    %1747 = vsyncpa [#allocation3], 1
    %s1748 = scalar_lea.sflag [#allocation3], 1
    %1749 = vsyncpa %s1748, 1
    %1750 = vsyncpa [#allocation6], 1
    %1751 = vsyncpa [#allocation4], 1
    %s1752 = scalar_lea.sflag [#allocation4], 1
    %1753 = vsyncpa %s1752, 1

</llo_original>
